<compile_context>
chip_gen: v7x
topology: tpu7x:2x2x1
jax: 0.10.0
libtpu: 0.0.40
codegen_flags: <defaults>
</compile_context>

<pallas_src>
import math
from functools import partial

import jax
import jax.numpy as jnp
from jax.experimental import pallas as pl
from jax.experimental.pallas import tpu as pltpu


def _round_up(x, m):
    return (x + m - 1) // m * m


# ----------------------------- Pallas kernel -------------------------------

def _modconv_kernel(*refs, k, wp, l_tile, halo, n_l_tiles, demodulate, eps,
                    has_gain):
    """Fused style modulation + demodulation + grouped conv for ONE sample.

    refs (gain_ref omitted when has_gain=False):
      style_ref : (1, C)         f32  per-sample (pre-scaled) style
      gain_ref  : (1, C)         f32  per-sample gain
      wbase_ref : (k*k, OC, C)   f32  shared (pre-normalised) base weight
      x_ref     : (C, Lx_pad)    cdt  padded sample, flat padded-width frame
      out_ref   : (OC, Lout_pad) out  flat conv output (padded-width frame)
    """
    if has_gain:
        style_ref, gain_ref, wbase_ref, x_ref, out_ref = refs
    else:
        style_ref, wbase_ref, x_ref, out_ref = refs

    k2 = k * k
    oc = out_ref.shape[0]
    c = x_ref.shape[0]

    # ---- modulate (+ demodulate, + gain) ONCE per sample, in f32 ----------
    w = wbase_ref[...] * style_ref[...].reshape(1, 1, c)          # (k2, OC, C)
    if demodulate:
        # reduction over the FULL C*k*k extent (never a partial tile)
        d = jax.lax.rsqrt(jnp.sum(w * w, axis=(0, 2), keepdims=True) + eps)
        w = w * d
    if has_gain:
        w = w * gain_ref[...].reshape(1, 1, c)
    w = w.astype(x_ref.dtype)                                     # matmul dtype

    # ---- accumulate k*k tap matmuls per lane-aligned spatial tile ---------
    chunk_len = l_tile + halo
    for lt in range(n_l_tiles):       # static loop; tile starts 128-aligned
        l0 = lt * l_tile
        chunk = x_ref[:, l0:l0 + chunk_len]                       # (C, l_tile+halo)
        acc = jnp.zeros((oc, l_tile), jnp.float32)
        for t in range(k2):
            # flat shift of tap (kh, kw) in the padded-width frame
            off = (t // k) * wp + (t % k)
            xs = chunk[:, off:off + l_tile]                       # (C, l_tile)
            acc = acc + jnp.dot(w[t], xs,
                                preferred_element_type=jnp.float32)
        out_ref[:, l0:l0 + l_tile] = acc.astype(out_ref.dtype)    # aligned store


# ----------------------------- Module wrapper ------------------------------

class ModulateConvLayer:
    """JAX/Pallas re-implementation of the PyTorch ModulateConvLayer."""

    def __init__(self, in_channels, out_channels, w_dim, kernel_size,
                 demodulate, eps, *, key):
        self.in_channels = in_channels
        self.out_channels = out_channels
        self.w_dim = w_dim
        self.kernel_size = kernel_size
        self.demodulate = demodulate
        self.eps = eps
        self.space_of_latent = 'W'

        k_w, k_s = jax.random.split(key)
        # conv weight ~ randn(out_ch, in_ch, k, k)
        self.weight = jax.random.normal(
            k_w, (out_channels, in_channels, kernel_size, kernel_size),
            dtype=jnp.float32)
        self.wscale = 1.0 / math.sqrt(kernel_size * kernel_size * in_channels)
        self.padding = kernel_size - 1

        # DenseLayer(style): weight ~ randn(in_ch, w_dim), wscale = 1/sqrt(w_dim),
        # bias init 1.0, bscale = 1.0, linear activation.
        self.style_weight = jax.random.normal(
            k_s, (in_channels, w_dim), dtype=jnp.float32)
        self.style_wscale = 1.0 / math.sqrt(w_dim)
        self.style_bias = jnp.full((in_channels,), 1.0, dtype=jnp.float32)

    # ----- style affine (W space -> style); tiny, left to XLA per review ---
    def forward_style(self, w):
        sol = self.space_of_latent.upper()
        if sol == 'W':
            assert w.ndim == 2 and w.shape[1] == self.w_dim
            style = (jnp.dot(w.astype(jnp.float32), self.style_weight.T)
                     * self.style_wscale + self.style_bias)
        elif sol == 'Y':
            assert w.ndim == 2 and w.shape[1] >= self.in_channels
            style = w[:, :self.in_channels].astype(jnp.float32)
        else:
            raise NotImplementedError(sol)
        return style                                             # float32

    # ----- full forward -----
    def __call__(self, x, w, gain=None, compute_dtype=None, l_tile=256):
        dtype = x.dtype
        N, C, H, W = x.shape
        assert C == self.in_channels
        k = self.kernel_size
        k2 = k * k
        OC = self.out_channels
        p = self.padding
        Ho, Wo = H + k - 1, W + k - 1
        Hp, Wp = H + 2 * p, W + 2 * p

        # matmul operand dtype (bf16 = half HBM traffic / 2x MXU throughput);
        # default keeps the input dtype (matches torch's weight.to(dtype)).
        cdt = jnp.dtype(compute_dtype) if compute_dtype is not None else jnp.dtype(dtype)

        style = self.forward_style(w)                            # (N, C) f32

        # base-weight / style pre-normalisation (tiny; XLA)
        if self.demodulate:
            wbase = self.weight * jax.lax.rsqrt(
                jnp.mean(jnp.square(self.weight), axis=(1, 2, 3), keepdims=True))
            mod_style = style * jax.lax.rsqrt(jnp.mean(jnp.square(style)))
        else:
            wbase = self.weight
            mod_style = style * self.wscale

        # weight laid out per-tap for the kernel: (k*k, OC, C), t = kh*k + kw
        wbase_t = jnp.transpose(wbase, (2, 3, 0, 1)).reshape(k2, OC, C)
        wbase_t = wbase_t.astype(jnp.float32)
        style_in = mod_style.astype(jnp.float32).reshape(N, 1, C)

        has_gain = gain is not None
        if has_gain:
            gain_in = jnp.broadcast_to(
                jnp.asarray(gain, jnp.float32), (N, C)).reshape(N, 1, C)

        # ---- pad x once and flatten into the padded-width frame ----
        assert l_tile % 128 == 0
        halo = _round_up((k - 1) * Wp + (k - 1), 128)
        lout = Ho * Wp                                   # flat output frame
        lout_pad = _round_up(lout, l_tile)               # lane-dense output
        n_l_tiles = lout_pad // l_tile
        lx_pad = lout_pad + halo                         # >= Hp*Wp, 128-mult

        xp = jnp.pad(x, ((0, 0), (0, 0), (p, p), (p, p)))
        xflat = xp.reshape(N, C, Hp * Wp)
        xflat = jnp.pad(xflat, ((0, 0), (0, 0), (0, lx_pad - Hp * Wp)))
        xflat = xflat.astype(cdt)

        kernel = partial(_modconv_kernel, k=k, wp=Wp, l_tile=l_tile, halo=halo,
                         n_l_tiles=n_l_tiles, demodulate=self.demodulate,
                         eps=self.eps, has_gain=has_gain)

        in_specs = [pl.BlockSpec((None, 1, C), lambda n: (n, 0, 0))]   # style
        inputs = [style_in]
        if has_gain:                                      # static branch
            in_specs.append(pl.BlockSpec((None, 1, C), lambda n: (n, 0, 0)))
            inputs.append(gain_in)
        in_specs += [
            pl.BlockSpec((k2, OC, C), lambda n: (0, 0, 0)),        # shared weight
            pl.BlockSpec((None, C, lx_pad), lambda n: (n, 0, 0)),  # x slab
        ]
        inputs += [wbase_t, xflat]
        out_specs = pl.BlockSpec((None, OC, lout_pad), lambda n: (n, 0, 0))

        flops = 2 * N * OC * C * k2 * Ho * Wo
        bytes_accessed = int(
            xflat.size * xflat.dtype.itemsize
            + N * OC * lout_pad * jnp.dtype(dtype).itemsize
            + wbase_t.size * 4 + style_in.size * 4
            + (gain_in.size * 4 if has_gain else 0))
        cost = pl.CostEstimate(flops=flops, transcendentals=N * OC,
                               bytes_accessed=bytes_accessed)

        # VMEM budget: double-buffered per-sample x slab + output slab + weights.
        vmem_need = (2 * (C * lx_pad * jnp.dtype(cdt).itemsize
                          + OC * lout_pad * jnp.dtype(dtype).itemsize)
                     + 4 * k2 * OC * C * 4 + 8 * C * 4)
        vmem_limit = int(min(64 * 1024 * 1024,
                             max(32 * 1024 * 1024, 2 * vmem_need)))

        out_frame = pl.pallas_call(
            kernel,
            out_shape=jax.ShapeDtypeStruct((N, OC, lout_pad), dtype),
            grid=(N,),
            in_specs=in_specs,
            out_specs=out_specs,
            compiler_params=pltpu.CompilerParams(
                dimension_semantics=("parallel",),   # batch -> both v7x TCs
                vmem_limit_bytes=vmem_limit),
            cost_estimate=cost,
        )(*inputs)

        # drop the frame padding: (N, OC, Ho*Wp[+pad]) -> (N, OC, Ho, Wo)
        out = out_frame[:, :, :lout].reshape(N, OC, Ho, Wp)[:, :, :, :Wo]
        assert out.dtype == dtype
        return out, style


# ------------------------- pure-XLA reference ------------------------------

def _reference_forward(layer, x, w, gain=None):
    """Verbatim port of the PyTorch forward using a grouped lax conv."""
    N, C, H, W = x.shape
    k, OC = layer.kernel_size, layer.out_channels
    style = layer.forward_style(w)
    if layer.demodulate:
        weight = layer.weight * jax.lax.rsqrt(
            jnp.mean(jnp.square(layer.weight), axis=(1, 2, 3), keepdims=True))
        _style = style * jax.lax.rsqrt(jnp.mean(jnp.square(style)))
    else:
        weight = layer.weight
        _style = style * layer.wscale
    wmod = weight[None] * _style.reshape(N, 1, C, 1, 1)
    if layer.demodulate:
        d = jax.lax.rsqrt(jnp.sum(jnp.square(wmod), axis=(2, 3, 4)) + layer.eps)
        wmod = wmod * d.reshape(N, OC, 1, 1, 1)
    if gain is not None:
        g = jnp.broadcast_to(jnp.asarray(gain, jnp.float32), (N, C))
        wmod = wmod * g.reshape(N, 1, C, 1, 1)
    out = jax.lax.conv_general_dilated(
        x.reshape(1, N * C, H, W),
        wmod.reshape(N * OC, C, k, k).astype(x.dtype),
        window_strides=(1, 1),
        padding=[(k - 1, k - 1), (k - 1, k - 1)],
        dimension_numbers=('NCHW', 'OIHW', 'NCHW'),
        feature_group_count=N)
    return out.reshape(N, OC, H + k - 1, W + k - 1), style


# --------------------------------- demo ------------------------------------

if __name__ == "__main__":
    key = jax.random.PRNGKey(0)
    k_layer, k_x, k_w = jax.random.split(key, 3)

    in_channels, out_channels, w_dim, ksize = 4, 8, 8, 3
    layer = ModulateConvLayer(
        in_channels=in_channels, out_channels=out_channels, w_dim=w_dim,
        kernel_size=ksize, demodulate=True, eps=1e-8, key=k_layer)

    x = jax.random.normal(k_x, (2, in_channels, 16, 16), dtype=jnp.float32)
    w = jax.random.normal(k_w, (2, w_dim), dtype=jnp.float32)

    out, style = layer(x, w)
    jax.block_until_ready((out, style))
    assert out.shape == (2, out_channels, 16 + ksize - 1, 16 + ksize - 1)
    assert out.dtype == x.dtype
    assert style.shape == (2, in_channels) and style.dtype == jnp.float32

    # structural correctness check vs the pure-XLA grouped-conv reference
    ref_out, ref_style = _reference_forward(layer, x, w)
    assert float(jnp.max(jnp.abs(style - ref_style))) < 1e-3
    max_err = float(jnp.max(jnp.abs(out - ref_out)))
    assert max_err < 5e-2, f"mismatch vs reference: max abs err {max_err}"

    # exercise the static-gain branch and the bf16 matmul fast path
    out2, _ = layer(x, w, gain=jnp.float32(1.5), compute_dtype=jnp.bfloat16)
    jax.block_until_ready(out2)
    assert out2.shape == out.shape and out2.dtype == x.dtype

    print("KERNEL_OK")
</pallas_src>

<mosaic_0001>
module attributes {stable_mosaic.version = 11 : i64} {
  func.func @_modconv_kernel(%arg0: i32, %arg1: memref<1x1x4xf32, #tpu.memory_space<vmem>>, %arg2: memref<9x8x4xf32, #tpu.memory_space<vmem>>, %arg3: memref<1x4x640xf32, #tpu.memory_space<vmem>>, %arg4: memref<1x8x512xf32, #tpu.memory_space<vmem>>) attributes {dimension_semantics = [#tpu.dimension_semantics<parallel>], iteration_bounds = array<i64: 2>, scalar_prefetch = 0 : i64, scratch_operands = 0 : i64, tpu.core_type = #tpu.core_type<tc>, window_params = [{transform_indices = @transform_0, window_bounds = array<i64: 1, 1, 4>}, {pipeline_mode = #tpu.pipeline_mode<synchronous>, transform_indices = @transform_1, window_bounds = array<i64: 9, 8, 4>}, {transform_indices = @transform_2, window_bounds = array<i64: 1, 4, 640>}, {transform_indices = @transform_3, window_bounds = array<i64: 1, 8, 512>}]} {
    %c0 = arith.constant 0 : index
    %c0_0 = arith.constant 0 : index
    %c0_1 = arith.constant 0 : index
    %0 = vector.load %arg2[%c0, %c0_0, %c0_1] : memref<9x8x4xf32, #tpu.memory_space<vmem>>, vector<9x8x4xf32>
    %c0_2 = arith.constant 0 : index
    %c0_3 = arith.constant 0 : index
    %c0_4 = arith.constant 0 : index
    %1 = vector.load %arg1[%c0_2, %c0_3, %c0_4] : memref<1x1x4xf32, #tpu.memory_space<vmem>>, vector<1x1x4xf32>
    %2 = vector.shape_cast %1 : vector<1x1x4xf32> to vector<1x4xf32>
    %3 = vector.shape_cast %2 : vector<1x4xf32> to vector<1x1x4xf32>
    %4 = vector.broadcast %3 : vector<1x1x4xf32> to vector<9x8x4xf32>
    %5 = arith.mulf %0, %4 : vector<9x8x4xf32>
    %6 = arith.mulf %5, %5 : vector<9x8x4xf32>
    %cst = arith.constant dense<0.000000e+00> : vector<8xf32>
    %7 = vector.multi_reduction <add>, %6, %cst [0, 2] : vector<9x8x4xf32> to vector<8xf32>
    %8 = vector.shape_cast %7 : vector<8xf32> to vector<1x8x1xf32>
    %cst_5 = arith.constant 9.99999993E-9 : f32
    %9 = vector.broadcast %cst_5 : f32 to vector<1x8x1xf32>
    %10 = arith.addf %8, %9 : vector<1x8x1xf32>
    %11 = math.rsqrt %10 : vector<1x8x1xf32>
    %12 = vector.broadcast %11 : vector<1x8x1xf32> to vector<9x8x4xf32>
    %13 = arith.mulf %5, %12 : vector<9x8x4xf32>
    %c0_6 = arith.constant 0 : index
    %c0_7 = arith.constant 0 : index
    %c0_8 = arith.constant 0 : index
    %14 = vector.load %arg3[%c0_6, %c0_7, %c0_8] : memref<1x4x640xf32, #tpu.memory_space<vmem>>, vector<1x4x384xf32>
    %15 = vector.shape_cast %14 : vector<1x4x384xf32> to vector<4x384xf32>
    %cst_9 = arith.constant 0.000000e+00 : f32
    %16 = vector.broadcast %cst_9 : f32 to vector<8x256xf32>
    %17 = vector.extract_strided_slice %15 {offsets = [0, 0], sizes = [4, 256], strides = [1, 1]} : vector<4x384xf32> to vector<4x256xf32>
    %18 = vector.extract_strided_slice %13 {offsets = [0, 0, 0], sizes = [1, 8, 4], strides = [1, 1, 1]} : vector<9x8x4xf32> to vector<1x8x4xf32>
    %19 = vector.shape_cast %18 : vector<1x8x4xf32> to vector<8x4xf32>
    %cst_10 = arith.constant dense<0.000000e+00> : vector<8x256xf32>
    %20 = tpu.matmul %19, %17, %cst_10 {dimension_numbers = #tpu.dot_dimension_numbers<[1], [0], [0], [1], [0, 0, 1, 1], [], []>} : vector<8x4xf32>, vector<4x256xf32>, vector<8x256xf32> -> vector<8x256xf32>
    %21 = arith.addf %16, %20 : vector<8x256xf32>
    %22 = vector.extract_strided_slice %15 {offsets = [0, 1], sizes = [4, 256], strides = [1, 1]} : vector<4x384xf32> to vector<4x256xf32>
    %23 = vector.extract_strided_slice %13 {offsets = [1, 0, 0], sizes = [1, 8, 4], strides = [1, 1, 1]} : vector<9x8x4xf32> to vector<1x8x4xf32>
    %24 = vector.shape_cast %23 : vector<1x8x4xf32> to vector<8x4xf32>
    %cst_11 = arith.constant dense<0.000000e+00> : vector<8x256xf32>
    %25 = tpu.matmul %24, %22, %cst_11 {dimension_numbers = #tpu.dot_dimension_numbers<[1], [0], [0], [1], [0, 0, 1, 1], [], []>} : vector<8x4xf32>, vector<4x256xf32>, vector<8x256xf32> -> vector<8x256xf32>
    %26 = arith.addf %21, %25 : vector<8x256xf32>
    %27 = vector.extract_strided_slice %15 {offsets = [0, 2], sizes = [4, 256], strides = [1, 1]} : vector<4x384xf32> to vector<4x256xf32>
    %28 = vector.extract_strided_slice %13 {offsets = [2, 0, 0], sizes = [1, 8, 4], strides = [1, 1, 1]} : vector<9x8x4xf32> to vector<1x8x4xf32>
    %29 = vector.shape_cast %28 : vector<1x8x4xf32> to vector<8x4xf32>
    %cst_12 = arith.constant dense<0.000000e+00> : vector<8x256xf32>
    %30 = tpu.matmul %29, %27, %cst_12 {dimension_numbers = #tpu.dot_dimension_numbers<[1], [0], [0], [1], [0, 0, 1, 1], [], []>} : vector<8x4xf32>, vector<4x256xf32>, vector<8x256xf32> -> vector<8x256xf32>
    %31 = arith.addf %26, %30 : vector<8x256xf32>
    %32 = vector.extract_strided_slice %15 {offsets = [0, 20], sizes = [4, 256], strides = [1, 1]} : vector<4x384xf32> to vector<4x256xf32>
    %33 = vector.extract_strided_slice %13 {offsets = [3, 0, 0], sizes = [1, 8, 4], strides = [1, 1, 1]} : vector<9x8x4xf32> to vector<1x8x4xf32>
    %34 = vector.shape_cast %33 : vector<1x8x4xf32> to vector<8x4xf32>
    %cst_13 = arith.constant dense<0.000000e+00> : vector<8x256xf32>
    %35 = tpu.matmul %34, %32, %cst_13 {dimension_numbers = #tpu.dot_dimension_numbers<[1], [0], [0], [1], [0, 0, 1, 1], [], []>} : vector<8x4xf32>, vector<4x256xf32>, vector<8x256xf32> -> vector<8x256xf32>
    %36 = arith.addf %31, %35 : vector<8x256xf32>
    %37 = vector.extract_strided_slice %15 {offsets = [0, 21], sizes = [4, 256], strides = [1, 1]} : vector<4x384xf32> to vector<4x256xf32>
    %38 = vector.extract_strided_slice %13 {offsets = [4, 0, 0], sizes = [1, 8, 4], strides = [1, 1, 1]} : vector<9x8x4xf32> to vector<1x8x4xf32>
    %39 = vector.shape_cast %38 : vector<1x8x4xf32> to vector<8x4xf32>
    %cst_14 = arith.constant dense<0.000000e+00> : vector<8x256xf32>
    %40 = tpu.matmul %39, %37, %cst_14 {dimension_numbers = #tpu.dot_dimension_numbers<[1], [0], [0], [1], [0, 0, 1, 1], [], []>} : vector<8x4xf32>, vector<4x256xf32>, vector<8x256xf32> -> vector<8x256xf32>
    %41 = arith.addf %36, %40 : vector<8x256xf32>
    %42 = vector.extract_strided_slice %15 {offsets = [0, 22], sizes = [4, 256], strides = [1, 1]} : vector<4x384xf32> to vector<4x256xf32>
    %43 = vector.extract_strided_slice %13 {offsets = [5, 0, 0], sizes = [1, 8, 4], strides = [1, 1, 1]} : vector<9x8x4xf32> to vector<1x8x4xf32>
    %44 = vector.shape_cast %43 : vector<1x8x4xf32> to vector<8x4xf32>
    %cst_15 = arith.constant dense<0.000000e+00> : vector<8x256xf32>
    %45 = tpu.matmul %44, %42, %cst_15 {dimension_numbers = #tpu.dot_dimension_numbers<[1], [0], [0], [1], [0, 0, 1, 1], [], []>} : vector<8x4xf32>, vector<4x256xf32>, vector<8x256xf32> -> vector<8x256xf32>
    %46 = arith.addf %41, %45 : vector<8x256xf32>
    %47 = vector.extract_strided_slice %15 {offsets = [0, 40], sizes = [4, 256], strides = [1, 1]} : vector<4x384xf32> to vector<4x256xf32>
    %48 = vector.extract_strided_slice %13 {offsets = [6, 0, 0], sizes = [1, 8, 4], strides = [1, 1, 1]} : vector<9x8x4xf32> to vector<1x8x4xf32>
    %49 = vector.shape_cast %48 : vector<1x8x4xf32> to vector<8x4xf32>
    %cst_16 = arith.constant dense<0.000000e+00> : vector<8x256xf32>
    %50 = tpu.matmul %49, %47, %cst_16 {dimension_numbers = #tpu.dot_dimension_numbers<[1], [0], [0], [1], [0, 0, 1, 1], [], []>} : vector<8x4xf32>, vector<4x256xf32>, vector<8x256xf32> -> vector<8x256xf32>
    %51 = arith.addf %46, %50 : vector<8x256xf32>
    %52 = vector.extract_strided_slice %15 {offsets = [0, 41], sizes = [4, 256], strides = [1, 1]} : vector<4x384xf32> to vector<4x256xf32>
    %53 = vector.extract_strided_slice %13 {offsets = [7, 0, 0], sizes = [1, 8, 4], strides = [1, 1, 1]} : vector<9x8x4xf32> to vector<1x8x4xf32>
    %54 = vector.shape_cast %53 : vector<1x8x4xf32> to vector<8x4xf32>
    %cst_17 = arith.constant dense<0.000000e+00> : vector<8x256xf32>
    %55 = tpu.matmul %54, %52, %cst_17 {dimension_numbers = #tpu.dot_dimension_numbers<[1], [0], [0], [1], [0, 0, 1, 1], [], []>} : vector<8x4xf32>, vector<4x256xf32>, vector<8x256xf32> -> vector<8x256xf32>
    %56 = arith.addf %51, %55 : vector<8x256xf32>
    %57 = vector.extract_strided_slice %15 {offsets = [0, 42], sizes = [4, 256], strides = [1, 1]} : vector<4x384xf32> to vector<4x256xf32>
    %58 = vector.extract_strided_slice %13 {offsets = [8, 0, 0], sizes = [1, 8, 4], strides = [1, 1, 1]} : vector<9x8x4xf32> to vector<1x8x4xf32>
    %59 = vector.shape_cast %58 : vector<1x8x4xf32> to vector<8x4xf32>
    %cst_18 = arith.constant dense<0.000000e+00> : vector<8x256xf32>
    %60 = tpu.matmul %59, %57, %cst_18 {dimension_numbers = #tpu.dot_dimension_numbers<[1], [0], [0], [1], [0, 0, 1, 1], [], []>} : vector<8x4xf32>, vector<4x256xf32>, vector<8x256xf32> -> vector<8x256xf32>
    %61 = arith.addf %56, %60 : vector<8x256xf32>
    %c0_19 = arith.constant 0 : index
    %c0_20 = arith.constant 0 : index
    %c0_21 = arith.constant 0 : index
    %62 = vector.load %arg4[%c0_19, %c0_20, %c0_21] : memref<1x8x512xf32, #tpu.memory_space<vmem>>, vector<1x8x256xf32>
    %63 = vector.shape_cast %62 : vector<1x8x256xf32> to vector<8x256xf32>
    %64 = vector.shape_cast %61 : vector<8x256xf32> to vector<1x8x256xf32>
    tpu.vector_store %arg4[%c0_19, %c0_20, %c0_21], %64 {strides = array<i32>} : memref<1x8x512xf32, #tpu.memory_space<vmem>>, vector<1x8x256xf32>,
    %c0_22 = arith.constant 0 : index
    %c0_23 = arith.constant 0 : index
    %c256 = arith.constant 256 : index
    %65 = vector.load %arg3[%c0_22, %c0_23, %c256] : memref<1x4x640xf32, #tpu.memory_space<vmem>>, vector<1x4x384xf32>
    %66 = vector.shape_cast %65 : vector<1x4x384xf32> to vector<4x384xf32>
    %cst_24 = arith.constant 0.000000e+00 : f32
    %67 = vector.broadcast %cst_24 : f32 to vector<8x256xf32>
    %68 = vector.extract_strided_slice %66 {offsets = [0, 0], sizes = [4, 256], strides = [1, 1]} : vector<4x384xf32> to vector<4x256xf32>
    %69 = vector.extract_strided_slice %13 {offsets = [0, 0, 0], sizes = [1, 8, 4], strides = [1, 1, 1]} : vector<9x8x4xf32> to vector<1x8x4xf32>
    %70 = vector.shape_cast %69 : vector<1x8x4xf32> to vector<8x4xf32>
    %cst_25 = arith.constant dense<0.000000e+00> : vector<8x256xf32>
    %71 = tpu.matmul %70, %68, %cst_25 {dimension_numbers = #tpu.dot_dimension_numbers<[1], [0], [0], [1], [0, 0, 1, 1], [], []>} : vector<8x4xf32>, vector<4x256xf32>, vector<8x256xf32> -> vector<8x256xf32>
    %72 = arith.addf %67, %71 : vector<8x256xf32>
    %73 = vector.extract_strided_slice %66 {offsets = [0, 1], sizes = [4, 256], strides = [1, 1]} : vector<4x384xf32> to vector<4x256xf32>
    %74 = vector.extract_strided_slice %13 {offsets = [1, 0, 0], sizes = [1, 8, 4], strides = [1, 1, 1]} : vector<9x8x4xf32> to vector<1x8x4xf32>
    %75 = vector.shape_cast %74 : vector<1x8x4xf32> to vector<8x4xf32>
    %cst_26 = arith.constant dense<0.000000e+00> : vector<8x256xf32>
    %76 = tpu.matmul %75, %73, %cst_26 {dimension_numbers = #tpu.dot_dimension_numbers<[1], [0], [0], [1], [0, 0, 1, 1], [], []>} : vector<8x4xf32>, vector<4x256xf32>, vector<8x256xf32> -> vector<8x256xf32>
    %77 = arith.addf %72, %76 : vector<8x256xf32>
    %78 = vector.extract_strided_slice %66 {offsets = [0, 2], sizes = [4, 256], strides = [1, 1]} : vector<4x384xf32> to vector<4x256xf32>
    %79 = vector.extract_strided_slice %13 {offsets = [2, 0, 0], sizes = [1, 8, 4], strides = [1, 1, 1]} : vector<9x8x4xf32> to vector<1x8x4xf32>
    %80 = vector.shape_cast %79 : vector<1x8x4xf32> to vector<8x4xf32>
    %cst_27 = arith.constant dense<0.000000e+00> : vector<8x256xf32>
    %81 = tpu.matmul %80, %78, %cst_27 {dimension_numbers = #tpu.dot_dimension_numbers<[1], [0], [0], [1], [0, 0, 1, 1], [], []>} : vector<8x4xf32>, vector<4x256xf32>, vector<8x256xf32> -> vector<8x256xf32>
    %82 = arith.addf %77, %81 : vector<8x256xf32>
    %83 = vector.extract_strided_slice %66 {offsets = [0, 20], sizes = [4, 256], strides = [1, 1]} : vector<4x384xf32> to vector<4x256xf32>
    %84 = vector.extract_strided_slice %13 {offsets = [3, 0, 0], sizes = [1, 8, 4], strides = [1, 1, 1]} : vector<9x8x4xf32> to vector<1x8x4xf32>
    %85 = vector.shape_cast %84 : vector<1x8x4xf32> to vector<8x4xf32>
    %cst_28 = arith.constant dense<0.000000e+00> : vector<8x256xf32>
    %86 = tpu.matmul %85, %83, %cst_28 {dimension_numbers = #tpu.dot_dimension_numbers<[1], [0], [0], [1], [0, 0, 1, 1], [], []>} : vector<8x4xf32>, vector<4x256xf32>, vector<8x256xf32> -> vector<8x256xf32>
    %87 = arith.addf %82, %86 : vector<8x256xf32>
    %88 = vector.extract_strided_slice %66 {offsets = [0, 21], sizes = [4, 256], strides = [1, 1]} : vector<4x384xf32> to vector<4x256xf32>
    %89 = vector.extract_strided_slice %13 {offsets = [4, 0, 0], sizes = [1, 8, 4], strides = [1, 1, 1]} : vector<9x8x4xf32> to vector<1x8x4xf32>
    %90 = vector.shape_cast %89 : vector<1x8x4xf32> to vector<8x4xf32>
    %cst_29 = arith.constant dense<0.000000e+00> : vector<8x256xf32>
    %91 = tpu.matmul %90, %88, %cst_29 {dimension_numbers = #tpu.dot_dimension_numbers<[1], [0], [0], [1], [0, 0, 1, 1], [], []>} : vector<8x4xf32>, vector<4x256xf32>, vector<8x256xf32> -> vector<8x256xf32>
    %92 = arith.addf %87, %91 : vector<8x256xf32>
    %93 = vector.extract_strided_slice %66 {offsets = [0, 22], sizes = [4, 256], strides = [1, 1]} : vector<4x384xf32> to vector<4x256xf32>
    %94 = vector.extract_strided_slice %13 {offsets = [5, 0, 0], sizes = [1, 8, 4], strides = [1, 1, 1]} : vector<9x8x4xf32> to vector<1x8x4xf32>
    %95 = vector.shape_cast %94 : vector<1x8x4xf32> to vector<8x4xf32>
    %cst_30 = arith.constant dense<0.000000e+00> : vector<8x256xf32>
    %96 = tpu.matmul %95, %93, %cst_30 {dimension_numbers = #tpu.dot_dimension_numbers<[1], [0], [0], [1], [0, 0, 1, 1], [], []>} : vector<8x4xf32>, vector<4x256xf32>, vector<8x256xf32> -> vector<8x256xf32>
    %97 = arith.addf %92, %96 : vector<8x256xf32>
    %98 = vector.extract_strided_slice %66 {offsets = [0, 40], sizes = [4, 256], strides = [1, 1]} : vector<4x384xf32> to vector<4x256xf32>
    %99 = vector.extract_strided_slice %13 {offsets = [6, 0, 0], sizes = [1, 8, 4], strides = [1, 1, 1]} : vector<9x8x4xf32> to vector<1x8x4xf32>
    %100 = vector.shape_cast %99 : vector<1x8x4xf32> to vector<8x4xf32>
    %cst_31 = arith.constant dense<0.000000e+00> : vector<8x256xf32>
    %101 = tpu.matmul %100, %98, %cst_31 {dimension_numbers = #tpu.dot_dimension_numbers<[1], [0], [0], [1], [0, 0, 1, 1], [], []>} : vector<8x4xf32>, vector<4x256xf32>, vector<8x256xf32> -> vector<8x256xf32>
    %102 = arith.addf %97, %101 : vector<8x256xf32>
    %103 = vector.extract_strided_slice %66 {offsets = [0, 41], sizes = [4, 256], strides = [1, 1]} : vector<4x384xf32> to vector<4x256xf32>
    %104 = vector.extract_strided_slice %13 {offsets = [7, 0, 0], sizes = [1, 8, 4], strides = [1, 1, 1]} : vector<9x8x4xf32> to vector<1x8x4xf32>
    %105 = vector.shape_cast %104 : vector<1x8x4xf32> to vector<8x4xf32>
    %cst_32 = arith.constant dense<0.000000e+00> : vector<8x256xf32>
    %106 = tpu.matmul %105, %103, %cst_32 {dimension_numbers = #tpu.dot_dimension_numbers<[1], [0], [0], [1], [0, 0, 1, 1], [], []>} : vector<8x4xf32>, vector<4x256xf32>, vector<8x256xf32> -> vector<8x256xf32>
    %107 = arith.addf %102, %106 : vector<8x256xf32>
    %108 = vector.extract_strided_slice %66 {offsets = [0, 42], sizes = [4, 256], strides = [1, 1]} : vector<4x384xf32> to vector<4x256xf32>
    %109 = vector.extract_strided_slice %13 {offsets = [8, 0, 0], sizes = [1, 8, 4], strides = [1, 1, 1]} : vector<9x8x4xf32> to vector<1x8x4xf32>
    %110 = vector.shape_cast %109 : vector<1x8x4xf32> to vector<8x4xf32>
    %cst_33 = arith.constant dense<0.000000e+00> : vector<8x256xf32>
    %111 = tpu.matmul %110, %108, %cst_33 {dimension_numbers = #tpu.dot_dimension_numbers<[1], [0], [0], [1], [0, 0, 1, 1], [], []>} : vector<8x4xf32>, vector<4x256xf32>, vector<8x256xf32> -> vector<8x256xf32>
    %112 = arith.addf %107, %111 : vector<8x256xf32>
    %c0_34 = arith.constant 0 : index
    %c0_35 = arith.constant 0 : index
    %c256_36 = arith.constant 256 : index
    %113 = vector.load %arg4[%c0_34, %c0_35, %c256_36] : memref<1x8x512xf32, #tpu.memory_space<vmem>>, vector<1x8x256xf32>
    %114 = vector.shape_cast %113 : vector<1x8x256xf32> to vector<8x256xf32>
    %115 = vector.shape_cast %112 : vector<8x256xf32> to vector<1x8x256xf32>
    tpu.vector_store %arg4[%c0_34, %c0_35, %c256_36], %115 {strides = array<i32>} : memref<1x8x512xf32, #tpu.memory_space<vmem>>, vector<1x8x256xf32>,
    return
  }
  func.func @transform_0(%arg0: i32) -> (i32, i32, i32) {
    %c0_i32 = arith.constant 0 : i32
    %c0_i32_0 = arith.constant 0 : i32
    %c0_i32_1 = arith.constant 0 : i32
    return %arg0, %c0_i32, %c0_i32_0 : i32, i32, i32
  }
  func.func @transform_1(%arg0: i32) -> (i32, i32, i32) {
    %c0_i32 = arith.constant 0 : i32
    %c0_i32_0 = arith.constant 0 : i32
    %c0_i32_1 = arith.constant 0 : i32
    %c0_i32_2 = arith.constant 0 : i32
    return %c0_i32, %c0_i32_0, %c0_i32_1 : i32, i32, i32
  }
  func.func @transform_2(%arg0: i32) -> (i32, i32, i32) {
    %c0_i32 = arith.constant 0 : i32
    %c0_i32_0 = arith.constant 0 : i32
    %c0_i32_1 = arith.constant 0 : i32
    return %arg0, %c0_i32, %c0_i32_0 : i32, i32, i32
  }
  func.func @transform_3(%arg0: i32) -> (i32, i32, i32) {
    %c0_i32 = arith.constant 0 : i32
    %c0_i32_0 = arith.constant 0 : i32
    %c0_i32_1 = arith.constant 0 : i32
    return %arg0, %c0_i32, %c0_i32_0 : i32, i32, i32
  }
}

</mosaic_0001>

<llo_original>
// kernel: tpu_custom_call.1
$region0: #{tpu_custom_call.1}
  #allocation0 [shape = 'u32[]', space=smem, size = 0x4, offset = 0x4, fixed_abs, tag = 'smem constant byte address 0x4 - core index']
  #allocation1 [shape = 'u32[144,128]{1,0:T(1,128)}', space=vmem, size = 0x12000, scoped, tag = 'internal scratch']
  %s0 = inlined_call_operand.vmem [shape: f32[2,1,4], index: 0, kind: input, shape index: {}]
  %s1 = inlined_call_operand.vmem [shape: f32[9,8,4], index: 1, kind: input, shape index: {}]
  %s2 = inlined_call_operand.vmem [shape: f32[2,4,640], index: 2, kind: input, shape index: {}]
  %s3 = inlined_call_operand.hbm [shape: f32[2,8,512], index: 3, kind: output, shape index: {}]
  %s4 = sld [smem:[#allocation0]]
  $region45: #{tpu_custom_call.1} parent=0
    _
  %s6 = ssub.s32 1, %s4
  %s7 = scalar_select 0, %s6, %s4
  $region1: #{tpu_custom_call.1} parent=0
    #allocation2 [shape = 'u8[32768]{0}', space=vmem, size = 0x8000, scoped, tag = 'output window, operand 0']
    #allocation3 [shape = 's32[2]{0}', space=sflag, size = 0x8, scoped, tag = 'scoped memory for tpu_custom_call.1']
    %8 = vsyncpa [#allocation3], 0
    %s9 = scalar_lea.sflag [#allocation3], 1
    %10 = vsyncpa %s9, 0
    loop: start=0, step=1, limit=4
    $region2: #{tpu_custom_call.1} parent=1 // loop_pre_header
      _
    $region3: #{tpu_custom_call.1} parent=1 // loop_header
      %s12 = sphi 0, %s16
      %p13 = scmp.ge.s32.totalorder %s12, 4
      %s22 = sphi 0, %s24
      %s25 = sphi 0, %s22
      %s26 = sphi 0, %s25
      %s42 = sphi 0, %s26
      %s46 = sphi 0, %s46
      %s48 = sphi 0, %s46
      %s49 = sphi 0, %s48
      %s63 = sphi 0, %s49
      %s69 = sphi 0, %s71
      %s72 = sphi 0, %s69
      %s73 = sphi 0, %s72
      %s89 = sphi 0, %s73
      %s95 = sphi 0, %s97
      %s98 = sphi 0, %s95
      %s99 = sphi 0, %s98
      %s115 = sphi 0, %s99
    $region4: #{tpu_custom_call.1} parent=1 // loop_header_branch
      %15 = sbr.rel (%p13) target = $region8
    $region5: #{tpu_custom_call.1} parent=1 // loop_body
      %s17 = ssub.s32 %s12, 1
      %s18 = ssub.s32 %s12, 2
      %s19 = sadd.s32 %s12, 1
      %s20 = ssub.s32 %s12, %s19
      %p21 = scmp.eq.s32.totalorder %s20, 0
      %s23 = sadd.s32 %s22, 1
      %s24 = scalar_select %p21, %s22, %s23
      %p27 = pneg %p21
      %p28 = scmp.eq.s32.totalorder %s12, 1
      %p29 = por %p27, %p28
      %p30 = scmp.ne.s32.totalorder %s22, %s25
      %p31 = scmp.eq.s32.totalorder %s12, 0
      %p32 = por %p30, %p31
      %p33 = scmp.ne.s32.totalorder %s22, %s25
      %p34 = scmp.eq.s32.totalorder %s17, 1
      %p35 = por %p33, %p34
      %p36 = scmp.ne.s32.totalorder %s25, %s26
      %p37 = scmp.eq.s32.totalorder %s17, 0
      %p38 = por %p36, %p37
      %p39 = scmp.ne.s32.totalorder %s25, %s26
      %p40 = scmp.eq.s32.totalorder %s18, 1
      %p41 = por %p39, %p40
      %p43 = scmp.ne.s32.totalorder %s26, %s42
      %p44 = scmp.eq.s32.totalorder %s18, 0
      %p45 = por %p43, %p44
      %s47 = sadd.s32 %s46, 1
      %p50 = scmp.eq.s32.totalorder %s12, 1
      %p51 = scmp.ne.s32.totalorder %s46, %s48
      %p52 = scmp.eq.s32.totalorder %s12, 0
      %p53 = por %p51, %p52
      %p54 = scmp.ne.s32.totalorder %s46, %s48
      %p55 = scmp.eq.s32.totalorder %s17, 1
      %p56 = por %p54, %p55
      %p57 = scmp.ne.s32.totalorder %s48, %s49
      %p58 = scmp.eq.s32.totalorder %s17, 0
      %p59 = por %p57, %p58
      %p60 = scmp.ne.s32.totalorder %s48, %s49
      %p61 = scmp.eq.s32.totalorder %s18, 1
      %p62 = por %p60, %p61
      %p64 = scmp.ne.s32.totalorder %s49, %s63
      %p65 = scmp.eq.s32.totalorder %s18, 0
      %p66 = por %p64, %p65
      %s67 = ssub.s32 %s12, %s19
      %p68 = scmp.eq.s32.totalorder %s67, 0
      %s70 = sadd.s32 %s69, 1
      %s71 = scalar_select %p68, %s69, %s70
      %p74 = pneg %p68
      %p75 = scmp.eq.s32.totalorder %s12, 1
      %p76 = por %p74, %p75
      %p77 = scmp.ne.s32.totalorder %s69, %s72
      %p78 = scmp.eq.s32.totalorder %s12, 0
      %p79 = por %p77, %p78
      %p80 = scmp.ne.s32.totalorder %s69, %s72
      %p81 = scmp.eq.s32.totalorder %s17, 1
      %p82 = por %p80, %p81
      %p83 = scmp.ne.s32.totalorder %s72, %s73
      %p84 = scmp.eq.s32.totalorder %s17, 0
      %p85 = por %p83, %p84
      %p86 = scmp.ne.s32.totalorder %s72, %s73
      %p87 = scmp.eq.s32.totalorder %s18, 1
      %p88 = por %p86, %p87
      %p90 = scmp.ne.s32.totalorder %s73, %s89
      %p91 = scmp.eq.s32.totalorder %s18, 0
      %p92 = por %p90, %p91
      %s93 = ssub.s32 %s12, %s19
      %p94 = scmp.eq.s32.totalorder %s93, 0
      %s96 = sadd.s32 %s95, 1
      %s97 = scalar_select %p94, %s95, %s96
      %p100 = pneg %p94
      %p101 = scmp.eq.s32.totalorder %s12, 1
      %p102 = por %p100, %p101
      %p103 = scmp.ne.s32.totalorder %s95, %s98
      %p104 = scmp.eq.s32.totalorder %s12, 0
      %p105 = por %p103, %p104
      %p106 = scmp.ne.s32.totalorder %s95, %s98
      %p107 = scmp.eq.s32.totalorder %s17, 1
      %p108 = por %p106, %p107
      %p109 = scmp.ne.s32.totalorder %s98, %s99
      %p110 = scmp.eq.s32.totalorder %s17, 0
      %p111 = por %p109, %p110
      %p112 = scmp.ne.s32.totalorder %s98, %s99
      %p113 = scmp.eq.s32.totalorder %s18, 1
      %p114 = por %p112, %p113
      %p116 = scmp.ne.s32.totalorder %s99, %s115
      %p117 = scmp.eq.s32.totalorder %s18, 0
      %p118 = por %p116, %p117
      %p119 = scmp.le.s32.totalorder 1, %s12
      %p120 = scmp.lt.s32.totalorder %s12, 3
      %p121 = pnand %p119, %p120
      %p122 = pneg %p121
      // Predicated region
      $region9: #{tpu_custom_call.1} parent=5 // pred_check
        _
      $region10: #{tpu_custom_call.1} parent=5 // pred_check_branch
        %124 = sbr.rel (%p121) target = $region12
      $region11: #{tpu_custom_call.1} parent=5 // pred_region
        %s125 = ssub.s32 %s12, 1
        // Predicated region
        $region13: #{tpu_custom_call.1} parent=11 // pred_check
          %p126 = pneg %p59
        $region14: #{tpu_custom_call.1} parent=11 // pred_check_branch
          %128 = sbr.rel (%p126) target = $region16
        $region15: #{tpu_custom_call.1} parent=11 // pred_region
          _
        $region16: #{tpu_custom_call.1} parent=11 // pred_fallthru
          _
      $region12: #{tpu_custom_call.1} parent=5 // pred_fallthru
        _
      %p129 = scmp.lt.s32.totalorder %s12, 2
      // Predicated region
      $region17: #{tpu_custom_call.1} parent=5 // pred_check
        %p130 = pneg %p129
      $region18: #{tpu_custom_call.1} parent=5 // pred_check_branch
        %132 = sbr.rel (%p130) target = $region20
      $region19: #{tpu_custom_call.1} parent=5 // pred_region
        // Predicated region
        $region21: #{tpu_custom_call.1} parent=19 // pred_check
          %p133 = pneg %p32
        $region22: #{tpu_custom_call.1} parent=19 // pred_check_branch
          %135 = sbr.rel (%p133) target = $region24
        $region23: #{tpu_custom_call.1} parent=19 // pred_region
          %p136 = scmp.lt.s32.totalorder %s12, 1
          %s137 = scalar_select %p136, %s12, 1
          %s138 = scalar_lea.vmem %s0, %s137
        $region24: #{tpu_custom_call.1} parent=19 // pred_fallthru
          _
        // Predicated region
        $region25: #{tpu_custom_call.1} parent=19 // pred_check
          %p139 = pneg %p79
        $region26: #{tpu_custom_call.1} parent=19 // pred_check_branch
          %141 = sbr.rel (%p139) target = $region28
        $region27: #{tpu_custom_call.1} parent=19 // pred_region
          %p142 = scmp.lt.s32.totalorder %s12, 1
          %s143 = scalar_select %p142, %s12, 1
          %s144 = smul.addr %s143, 5
          %s145 = smul.addr %s144, 4
          %s146 = scalar_lea.vmem %s2, %s145
        $region28: #{tpu_custom_call.1} parent=19 // pred_fallthru
          _
      $region20: #{tpu_custom_call.1} parent=5 // pred_fallthru
        _
      %p147 = scmp.le.s32.totalorder 1, %s12
      %p148 = scmp.lt.s32.totalorder %s12, 3
      %p149 = pnand %p147, %p148
      %p150 = pneg %p149
      // Predicated region
      $region29: #{tpu_custom_call.1} parent=5 // pred_check
        _
      $region30: #{tpu_custom_call.1} parent=5 // pred_check_branch
        %152 = sbr.rel (%p149) target = $region32
      $region31: #{tpu_custom_call.1} parent=5 // pred_region
        %s153 = ssub.s32 %s12, 1
        %p154 = scmp.lt.s32.totalorder %s17, 1
        %s155 = scalar_select %p154, %s17, 1
        %s156 = scalar_lea.vmem %s0, %s155
        %p157 = pneg %p38
        %p158 = pneg %p35
        %p159 = pneg %p59
        %p160 = pneg %p56
        %p161 = scmp.lt.s32.totalorder %s17, 1
        %s162 = scalar_select %p161, %s17, 1
        %s163 = smul.addr %s162, 5
        %s164 = smul.addr %s163, 4
        %s165 = scalar_lea.vmem %s2, %s164
        %p166 = pneg %p85
        %p167 = pneg %p82
        %p168 = pneg %p111
        %p169 = pneg %p108
        %s170 = sand.u32 %s98, 1
        %s171 = scalar_lea.sflag [#allocation3], %s170
        %s172 = sand.u32 %s98, 1
        %s173 = smul.addr %s172, 32
        %s174 = scalar_lea.vmem [#allocation2], %s173
        %p175 = scmp.lt.s32.totalorder %s17, 1
        %s176 = scalar_select %p175, %s17, 1
        %s177 = scalar_lea.vmem %s0, %s176
        %p178 = scmp.lt.s32.totalorder %s17, 1
        %s179 = scalar_select %p178, %s17, 1
        %s180 = smul.addr %s179, 5
        %s181 = smul.addr %s180, 4
        %s182 = scalar_lea.vmem %s2, %s181
        %v183 = vld [vmem:[%s1] sm:$0xff]
        %v184 = vld [vmem:[%s1 + $0x8] sm:$0xff]
        %v185 = vld [vmem:[%s1 + $0x10] sm:$0xff]
        %v186 = vld [vmem:[%s1 + $0x18] sm:$0xff]
        %v187 = vld [vmem:[%s1 + $0x20] sm:$0xff]
        %v188 = vld [vmem:[%s1 + $0x28] sm:$0xff]
        %v189 = vld [vmem:[%s1 + $0x30] sm:$0xff]
        %v190 = vld [vmem:[%s1 + $0x38] sm:$0xff]
        %v191 = vld [vmem:[%s1 + $0x40] sm:$0xff]
        %v192 = vld [vmem:[%s177] sm:$0x1]
        %v194 = vlaneseq
        %v195 = vshrl.u32 %v194, 7
        %v196 = vsub.s32 0, %v195
        %v197 = vrot.slane %v192, %v196
        %v199 = vmul.f32 %v183, %v197
        %v200 = vmul.f32 %v184, %v197
        %v201 = vmul.f32 %v185, %v197
        %v202 = vmul.f32 %v186, %v197
        %v203 = vmul.f32 %v187, %v197
        %v204 = vmul.f32 %v188, %v197
        %v205 = vmul.f32 %v189, %v197
        %v206 = vmul.f32 %v190, %v197
        %v207 = vmul.f32 %v191, %v197
        %v208 = vmul.f32 %v199, %v199
        %v209 = vmul.f32 %v200, %v200
        %v210 = vmul.f32 %v201, %v201
        %v211 = vmul.f32 %v202, %v202
        %v212 = vmul.f32 %v203, %v203
        %v213 = vmul.f32 %v204, %v204
        %v214 = vmul.f32 %v205, %v205
        %v215 = vmul.f32 %v206, %v206
        %v216 = vmul.f32 %v207, %v207
        %vm217 = vcmask 31744
        %v218 = vsel %vm217, %v208, 0.0
        %v219 = vsel %vm217, %v209, 0.0
        %v220 = vadd.f32 %v218, %v219
        %v221 = vsel %vm217, %v210, 0.0
        %v222 = vadd.f32 %v220, %v221
        %v223 = vsel %vm217, %v211, 0.0
        %v224 = vadd.f32 %v222, %v223
        %v225 = vsel %vm217, %v212, 0.0
        %v226 = vadd.f32 %v224, %v225
        %v227 = vsel %vm217, %v213, 0.0
        %v228 = vadd.f32 %v226, %v227
        %v229 = vsel %vm217, %v214, 0.0
        %v230 = vadd.f32 %v228, %v229
        %v231 = vsel %vm217, %v215, 0.0
        %v232 = vadd.f32 %v230, %v231
        %v233 = vsel %vm217, %v216, 0.0
        %v234 = vadd.f32 %v232, %v233
        %235 = vadd.xlane.f32.xlu0 %v234
        %v236 = vpop.xlane.xlu0 %235
        %v237 = vadd.f32 %v236, 1e-08
        %v238 = vrsqrt.pop %v237
        %v239 = vmul.f32 %v199, %v238
        %v240 = vmul.f32 %v200, %v238
        %v241 = vmul.f32 %v201, %v238
        %v242 = vmul.f32 %v202, %v238
        %v243 = vmul.f32 %v203, %v238
        %v244 = vmul.f32 %v204, %v238
        %v245 = vmul.f32 %v205, %v238
        %v246 = vmul.f32 %v206, %v238
        %v247 = vmul.f32 %v207, %v238
        %v248 = vld [vmem:[%s182] sm:$0xff]
        %v249 = vld [vmem:[%s182 + $0x8] sm:$0xf]
        %v252 = vcombine.high %v248, %v248
        %253 = vrot.lane.b32.xlu0 %v248, 127
        %v254 = vpop.permute.xlu0 %253
        %255 = vrot.lane.b32.xlu0 %v252, 127
        %v256 = vpop.permute.xlu0 %255
        %257 = vrot.lane.b32.xlu0 %v249, 127
        %v258 = vpop.permute.xlu0 %257
        %vm259 = vcmask 1039360
        %v260 = vsel %vm259, %v254, %v256
        %v261 = vsel %vm259, %v256, %v258
        %v263 = vsel %vm217, %v240, 0
        %vm265 = vcmask 1043456
        %v266 = vsel %vm265, %v260, 0
        %v268 = vsel %vm265, %v261, 0
        %270 = vmatprep.subr.mxu0 %v268
        %271 = vmatpush1.msra.mxu0 %v266
        %272 = vmatprep.subr.mxu0 0.0
        %273 = vmatpush1.msra.mxu0 0.0
        %274 = vmatprep.subr.mxu0 0.0
        %275 = vmatpush1.msra.mxu0 0.0
        %276 = vmatprep.subr.mxu0 0.0
        %277 = vmatpush1.msra.mxu0 0.0
        %278 = vmatprep.subr.mxu0 0.0
        %279 = vmatpush1.msra.mxu0 0.0
        %280 = vmatprep.subr.mxu0 0.0
        %281 = vmatpush1.msra.mxu0 0.0
        %282 = vmatprep.subr.mxu0 0.0
        %283 = vmatpush1.msra.mxu0 0.0
        %284 = vmatprep.subr.mxu0 0.0
        %285 = vmatpush1.msra.mxu0 0.0
        %286 = vmatprep.subr.mxu0 0.0
        %287 = vmatpush1.msra.mxu0 0.0
        %288 = vmatprep.subr.mxu0 0.0
        %289 = vmatpush1.msra.mxu0 0.0
        %290 = vmatprep.subr.mxu0 0.0
        %291 = vmatpush1.msra.mxu0 0.0
        %292 = vmatprep.subr.mxu0 0.0
        %293 = vmatpush1.msra.mxu0 0.0
        %294 = vmatprep.subr.mxu0 0.0
        %295 = vmatpush1.msra.mxu0 0.0
        %296 = vmatprep.subr.mxu0 0.0
        %297 = vmatpush1.msra.mxu0 0.0
        %298 = vmatprep.subr.mxu0 0.0
        %299 = vmatpush1.msra.mxu0 0.0
        %300 = vmatprep.subr.mxu0 0.0
        %301 = vmatpush1.msra.mxu0 0.0
        %302 = vmatprep.subr.mxu0 0.0
        %303 = vmatpush1.msra.mxu0 0.0
        %304 = vmatprep.subr.mxu0 0.0
        %305 = vmatpush1.msra.mxu0 0.0
        %306 = vmatprep.subr.mxu0 0.0
        %307 = vmatpush1.msra.mxu0 0.0
        %308 = vmatprep.subr.mxu0 0.0
        %309 = vmatpush1.msra.mxu0 0.0
        %310 = vmatprep.subr.mxu0 0.0
        %311 = vmatpush1.msra.mxu0 0.0
        %312 = vmatprep.subr.mxu0 0.0
        %313 = vmatpush1.msra.mxu0 0.0
        %314 = vmatprep.subr.mxu0 0.0
        %315 = vmatpush1.msra.mxu0 0.0
        %316 = vmatprep.subr.mxu0 0.0
        %317 = vmatpush1.msra.mxu0 0.0
        %318 = vmatprep.subr.mxu0 0.0
        %319 = vmatpush1.msra.mxu0 0.0
        %320 = vmatprep.subr.mxu0 0.0
        %321 = vmatpush1.msra.mxu0 0.0
        %322 = vmatprep.subr.mxu0 0.0
        %323 = vmatpush1.msra.mxu0 0.0
        %324 = vmatprep.subr.mxu0 0.0
        %325 = vmatpush1.msra.mxu0 0.0
        %326 = vmatprep.subr.mxu0 0.0
        %327 = vmatpush1.msra.mxu0 0.0
        %328 = vmatprep.subr.mxu0 0.0
        %329 = vmatpush1.msra.mxu0 0.0
        %330 = vmatprep.subr.mxu0 0.0
        %331 = vmatpush1.msra.mxu0 0.0
        %332 = vmatprep.subr.mxu0 0.0
        %333 = vmatpush1.msra.mxu0 0.0
        %334 = vmatprep.mubr.f32.mxu0 0.0
        %335 = vmatmul.mubr.f32.gmra.mrb[0].mxu0 %v263
        %v336 = vpop.f32.mrb[0].mxu0
        %v337 = vadd.f32 0.0, %v336
        %v338 = vpop.f32.mrb[0].mxu0
        %v339 = vadd.f32 0.0, %v338
        %340 = vdwg.mxu0
        %v342 = vsel %vm217, %v239, 0
        %v344 = vsel %vm265, %v248, 0
        %v346 = vsel %vm265, %v252, 0
        %348 = vmatprep.subr.mxu0 %v346
        %349 = vmatpush1.msra.mxu0 %v344
        %350 = vmatprep.subr.mxu0 0.0
        %351 = vmatpush1.msra.mxu0 0.0
        %352 = vmatprep.subr.mxu0 0.0
        %353 = vmatpush1.msra.mxu0 0.0
        %354 = vmatprep.subr.mxu0 0.0
        %355 = vmatpush1.msra.mxu0 0.0
        %356 = vmatprep.subr.mxu0 0.0
        %357 = vmatpush1.msra.mxu0 0.0
        %358 = vmatprep.subr.mxu0 0.0
        %359 = vmatpush1.msra.mxu0 0.0
        %360 = vmatprep.subr.mxu0 0.0
        %361 = vmatpush1.msra.mxu0 0.0
        %362 = vmatprep.subr.mxu0 0.0
        %363 = vmatpush1.msra.mxu0 0.0
        %364 = vmatprep.subr.mxu0 0.0
        %365 = vmatpush1.msra.mxu0 0.0
        %366 = vmatprep.subr.mxu0 0.0
        %367 = vmatpush1.msra.mxu0 0.0
        %368 = vmatprep.subr.mxu0 0.0
        %369 = vmatpush1.msra.mxu0 0.0
        %370 = vmatprep.subr.mxu0 0.0
        %371 = vmatpush1.msra.mxu0 0.0
        %372 = vmatprep.subr.mxu0 0.0
        %373 = vmatpush1.msra.mxu0 0.0
        %374 = vmatprep.subr.mxu0 0.0
        %375 = vmatpush1.msra.mxu0 0.0
        %376 = vmatprep.subr.mxu0 0.0
        %377 = vmatpush1.msra.mxu0 0.0
        %378 = vmatprep.subr.mxu0 0.0
        %379 = vmatpush1.msra.mxu0 0.0
        %380 = vmatprep.subr.mxu0 0.0
        %381 = vmatpush1.msra.mxu0 0.0
        %382 = vmatprep.subr.mxu0 0.0
        %383 = vmatpush1.msra.mxu0 0.0
        %384 = vmatprep.subr.mxu0 0.0
        %385 = vmatpush1.msra.mxu0 0.0
        %386 = vmatprep.subr.mxu0 0.0
        %387 = vmatpush1.msra.mxu0 0.0
        %388 = vmatprep.subr.mxu0 0.0
        %389 = vmatpush1.msra.mxu0 0.0
        %390 = vmatprep.subr.mxu0 0.0
        %391 = vmatpush1.msra.mxu0 0.0
        %392 = vmatprep.subr.mxu0 0.0
        %393 = vmatpush1.msra.mxu0 0.0
        %394 = vmatprep.subr.mxu0 0.0
        %395 = vmatpush1.msra.mxu0 0.0
        %396 = vmatprep.subr.mxu0 0.0
        %397 = vmatpush1.msra.mxu0 0.0
        %398 = vmatprep.subr.mxu0 0.0
        %399 = vmatpush1.msra.mxu0 0.0
        %400 = vmatprep.subr.mxu0 0.0
        %401 = vmatpush1.msra.mxu0 0.0
        %402 = vmatprep.subr.mxu0 0.0
        %403 = vmatpush1.msra.mxu0 0.0
        %404 = vmatprep.subr.mxu0 0.0
        %405 = vmatpush1.msra.mxu0 0.0
        %406 = vmatprep.subr.mxu0 0.0
        %407 = vmatpush1.msra.mxu0 0.0
        %408 = vmatprep.subr.mxu0 0.0
        %409 = vmatpush1.msra.mxu0 0.0
        %410 = vmatprep.subr.mxu0 0.0
        %411 = vmatpush1.msra.mxu0 0.0
        %412 = vmatprep.mubr.f32.mxu0 0.0
        %413 = vmatmul.mubr.f32.gmra.mrb[0].mxu0 %v342
        %v414 = vpop.f32.mrb[0].mxu0
        %v415 = vadd.f32 %v337, %v414
        %v416 = vpop.f32.mrb[0].mxu0
        %v417 = vadd.f32 %v339, %v416
        %418 = vdwg.mxu0
        %419 = vrot.lane.b32.xlu0 %v248, 126
        %v420 = vpop.permute.xlu0 %419
        %421 = vrot.lane.b32.xlu0 %v252, 126
        %v422 = vpop.permute.xlu0 %421
        %423 = vrot.lane.b32.xlu0 %v249, 126
        %v424 = vpop.permute.xlu0 %423
        %vm425 = vcmask 1031168
        %v426 = vsel %vm425, %v420, %v422
        %v427 = vsel %vm425, %v422, %v424
        %v429 = vsel %vm217, %v241, 0
        %v431 = vsel %vm265, %v426, 0
        %v433 = vsel %vm265, %v427, 0
        %435 = vmatprep.subr.mxu0 %v433
        %436 = vmatpush1.msra.mxu0 %v431
        %437 = vmatprep.subr.mxu0 0.0
        %438 = vmatpush1.msra.mxu0 0.0
        %439 = vmatprep.subr.mxu0 0.0
        %440 = vmatpush1.msra.mxu0 0.0
        %441 = vmatprep.subr.mxu0 0.0
        %442 = vmatpush1.msra.mxu0 0.0
        %443 = vmatprep.subr.mxu0 0.0
        %444 = vmatpush1.msra.mxu0 0.0
        %445 = vmatprep.subr.mxu0 0.0
        %446 = vmatpush1.msra.mxu0 0.0
        %447 = vmatprep.subr.mxu0 0.0
        %448 = vmatpush1.msra.mxu0 0.0
        %449 = vmatprep.subr.mxu0 0.0
        %450 = vmatpush1.msra.mxu0 0.0
        %451 = vmatprep.subr.mxu0 0.0
        %452 = vmatpush1.msra.mxu0 0.0
        %453 = vmatprep.subr.mxu0 0.0
        %454 = vmatpush1.msra.mxu0 0.0
        %455 = vmatprep.subr.mxu0 0.0
        %456 = vmatpush1.msra.mxu0 0.0
        %457 = vmatprep.subr.mxu0 0.0
        %458 = vmatpush1.msra.mxu0 0.0
        %459 = vmatprep.subr.mxu0 0.0
        %460 = vmatpush1.msra.mxu0 0.0
        %461 = vmatprep.subr.mxu0 0.0
        %462 = vmatpush1.msra.mxu0 0.0
        %463 = vmatprep.subr.mxu0 0.0
        %464 = vmatpush1.msra.mxu0 0.0
        %465 = vmatprep.subr.mxu0 0.0
        %466 = vmatpush1.msra.mxu0 0.0
        %467 = vmatprep.subr.mxu0 0.0
        %468 = vmatpush1.msra.mxu0 0.0
        %469 = vmatprep.subr.mxu0 0.0
        %470 = vmatpush1.msra.mxu0 0.0
        %471 = vmatprep.subr.mxu0 0.0
        %472 = vmatpush1.msra.mxu0 0.0
        %473 = vmatprep.subr.mxu0 0.0
        %474 = vmatpush1.msra.mxu0 0.0
        %475 = vmatprep.subr.mxu0 0.0
        %476 = vmatpush1.msra.mxu0 0.0
        %477 = vmatprep.subr.mxu0 0.0
        %478 = vmatpush1.msra.mxu0 0.0
        %479 = vmatprep.subr.mxu0 0.0
        %480 = vmatpush1.msra.mxu0 0.0
        %481 = vmatprep.subr.mxu0 0.0
        %482 = vmatpush1.msra.mxu0 0.0
        %483 = vmatprep.subr.mxu0 0.0
        %484 = vmatpush1.msra.mxu0 0.0
        %485 = vmatprep.subr.mxu0 0.0
        %486 = vmatpush1.msra.mxu0 0.0
        %487 = vmatprep.subr.mxu0 0.0
        %488 = vmatpush1.msra.mxu0 0.0
        %489 = vmatprep.subr.mxu0 0.0
        %490 = vmatpush1.msra.mxu0 0.0
        %491 = vmatprep.subr.mxu0 0.0
        %492 = vmatpush1.msra.mxu0 0.0
        %493 = vmatprep.subr.mxu0 0.0
        %494 = vmatpush1.msra.mxu0 0.0
        %495 = vmatprep.subr.mxu0 0.0
        %496 = vmatpush1.msra.mxu0 0.0
        %497 = vmatprep.subr.mxu0 0.0
        %498 = vmatpush1.msra.mxu0 0.0
        %499 = vmatprep.mubr.f32.mxu0 0.0
        %500 = vmatmul.mubr.f32.gmra.mrb[0].mxu0 %v429
        %v501 = vpop.f32.mrb[0].mxu0
        %v502 = vadd.f32 0.0, %v501
        %v503 = vpop.f32.mrb[0].mxu0
        %v504 = vadd.f32 0.0, %v503
        %505 = vdwg.mxu0
        %v506 = vadd.f32 %v415, %v502
        %v507 = vadd.f32 %v417, %v504
        %508 = vrot.lane.b32.xlu0 %v248, 108
        %v509 = vpop.permute.xlu0 %508
        %510 = vrot.lane.b32.xlu0 %v252, 108
        %v511 = vpop.permute.xlu0 %510
        %512 = vrot.lane.b32.xlu0 %v249, 108
        %v513 = vpop.permute.xlu0 %512
        %vm514 = vcmask 883712
        %v515 = vsel %vm514, %v509, %v511
        %v516 = vsel %vm514, %v511, %v513
        %v518 = vsel %vm217, %v242, 0
        %v520 = vsel %vm265, %v515, 0
        %v522 = vsel %vm265, %v516, 0
        %524 = vmatprep.subr.mxu0 %v522
        %525 = vmatpush1.msra.mxu0 %v520
        %526 = vmatprep.subr.mxu0 0.0
        %527 = vmatpush1.msra.mxu0 0.0
        %528 = vmatprep.subr.mxu0 0.0
        %529 = vmatpush1.msra.mxu0 0.0
        %530 = vmatprep.subr.mxu0 0.0
        %531 = vmatpush1.msra.mxu0 0.0
        %532 = vmatprep.subr.mxu0 0.0
        %533 = vmatpush1.msra.mxu0 0.0
        %534 = vmatprep.subr.mxu0 0.0
        %535 = vmatpush1.msra.mxu0 0.0
        %536 = vmatprep.subr.mxu0 0.0
        %537 = vmatpush1.msra.mxu0 0.0
        %538 = vmatprep.subr.mxu0 0.0
        %539 = vmatpush1.msra.mxu0 0.0
        %540 = vmatprep.subr.mxu0 0.0
        %541 = vmatpush1.msra.mxu0 0.0
        %542 = vmatprep.subr.mxu0 0.0
        %543 = vmatpush1.msra.mxu0 0.0
        %544 = vmatprep.subr.mxu0 0.0
        %545 = vmatpush1.msra.mxu0 0.0
        %546 = vmatprep.subr.mxu0 0.0
        %547 = vmatpush1.msra.mxu0 0.0
        %548 = vmatprep.subr.mxu0 0.0
        %549 = vmatpush1.msra.mxu0 0.0
        %550 = vmatprep.subr.mxu0 0.0
        %551 = vmatpush1.msra.mxu0 0.0
        %552 = vmatprep.subr.mxu0 0.0
        %553 = vmatpush1.msra.mxu0 0.0
        %554 = vmatprep.subr.mxu0 0.0
        %555 = vmatpush1.msra.mxu0 0.0
        %556 = vmatprep.subr.mxu0 0.0
        %557 = vmatpush1.msra.mxu0 0.0
        %558 = vmatprep.subr.mxu0 0.0
        %559 = vmatpush1.msra.mxu0 0.0
        %560 = vmatprep.subr.mxu0 0.0
        %561 = vmatpush1.msra.mxu0 0.0
        %562 = vmatprep.subr.mxu0 0.0
        %563 = vmatpush1.msra.mxu0 0.0
        %564 = vmatprep.subr.mxu0 0.0
        %565 = vmatpush1.msra.mxu0 0.0
        %566 = vmatprep.subr.mxu0 0.0
        %567 = vmatpush1.msra.mxu0 0.0
        %568 = vmatprep.subr.mxu0 0.0
        %569 = vmatpush1.msra.mxu0 0.0
        %570 = vmatprep.subr.mxu0 0.0
        %571 = vmatpush1.msra.mxu0 0.0
        %572 = vmatprep.subr.mxu0 0.0
        %573 = vmatpush1.msra.mxu0 0.0
        %574 = vmatprep.subr.mxu0 0.0
        %575 = vmatpush1.msra.mxu0 0.0
        %576 = vmatprep.subr.mxu0 0.0
        %577 = vmatpush1.msra.mxu0 0.0
        %578 = vmatprep.subr.mxu0 0.0
        %579 = vmatpush1.msra.mxu0 0.0
        %580 = vmatprep.subr.mxu0 0.0
        %581 = vmatpush1.msra.mxu0 0.0
        %582 = vmatprep.subr.mxu0 0.0
        %583 = vmatpush1.msra.mxu0 0.0
        %584 = vmatprep.subr.mxu0 0.0
        %585 = vmatpush1.msra.mxu0 0.0
        %586 = vmatprep.subr.mxu0 0.0
        %587 = vmatpush1.msra.mxu0 0.0
        %588 = vmatprep.mubr.f32.mxu0 0.0
        %589 = vmatmul.mubr.f32.gmra.mrb[0].mxu0 %v518
        %v590 = vpop.f32.mrb[0].mxu0
        %v591 = vadd.f32 0.0, %v590
        %v592 = vpop.f32.mrb[0].mxu0
        %v593 = vadd.f32 0.0, %v592
        %594 = vdwg.mxu0
        %v595 = vadd.f32 %v506, %v591
        %v596 = vadd.f32 %v507, %v593
        %597 = vrot.lane.b32.xlu0 %v248, 107
        %v598 = vpop.permute.xlu0 %597
        %599 = vrot.lane.b32.xlu0 %v252, 107
        %v600 = vpop.permute.xlu0 %599
        %601 = vrot.lane.b32.xlu0 %v249, 107
        %v602 = vpop.permute.xlu0 %601
        %vm603 = vcmask 875520
        %v604 = vsel %vm603, %v598, %v600
        %v605 = vsel %vm603, %v600, %v602
        %v607 = vsel %vm217, %v243, 0
        %v609 = vsel %vm265, %v604, 0
        %v611 = vsel %vm265, %v605, 0
        %613 = vmatprep.subr.mxu0 %v611
        %614 = vmatpush1.msra.mxu0 %v609
        %615 = vmatprep.subr.mxu0 0.0
        %616 = vmatpush1.msra.mxu0 0.0
        %617 = vmatprep.subr.mxu0 0.0
        %618 = vmatpush1.msra.mxu0 0.0
        %619 = vmatprep.subr.mxu0 0.0
        %620 = vmatpush1.msra.mxu0 0.0
        %621 = vmatprep.subr.mxu0 0.0
        %622 = vmatpush1.msra.mxu0 0.0
        %623 = vmatprep.subr.mxu0 0.0
        %624 = vmatpush1.msra.mxu0 0.0
        %625 = vmatprep.subr.mxu0 0.0
        %626 = vmatpush1.msra.mxu0 0.0
        %627 = vmatprep.subr.mxu0 0.0
        %628 = vmatpush1.msra.mxu0 0.0
        %629 = vmatprep.subr.mxu0 0.0
        %630 = vmatpush1.msra.mxu0 0.0
        %631 = vmatprep.subr.mxu0 0.0
        %632 = vmatpush1.msra.mxu0 0.0
        %633 = vmatprep.subr.mxu0 0.0
        %634 = vmatpush1.msra.mxu0 0.0
        %635 = vmatprep.subr.mxu0 0.0
        %636 = vmatpush1.msra.mxu0 0.0
        %637 = vmatprep.subr.mxu0 0.0
        %638 = vmatpush1.msra.mxu0 0.0
        %639 = vmatprep.subr.mxu0 0.0
        %640 = vmatpush1.msra.mxu0 0.0
        %641 = vmatprep.subr.mxu0 0.0
        %642 = vmatpush1.msra.mxu0 0.0
        %643 = vmatprep.subr.mxu0 0.0
        %644 = vmatpush1.msra.mxu0 0.0
        %645 = vmatprep.subr.mxu0 0.0
        %646 = vmatpush1.msra.mxu0 0.0
        %647 = vmatprep.subr.mxu0 0.0
        %648 = vmatpush1.msra.mxu0 0.0
        %649 = vmatprep.subr.mxu0 0.0
        %650 = vmatpush1.msra.mxu0 0.0
        %651 = vmatprep.subr.mxu0 0.0
        %652 = vmatpush1.msra.mxu0 0.0
        %653 = vmatprep.subr.mxu0 0.0
        %654 = vmatpush1.msra.mxu0 0.0
        %655 = vmatprep.subr.mxu0 0.0
        %656 = vmatpush1.msra.mxu0 0.0
        %657 = vmatprep.subr.mxu0 0.0
        %658 = vmatpush1.msra.mxu0 0.0
        %659 = vmatprep.subr.mxu0 0.0
        %660 = vmatpush1.msra.mxu0 0.0
        %661 = vmatprep.subr.mxu0 0.0
        %662 = vmatpush1.msra.mxu0 0.0
        %663 = vmatprep.subr.mxu0 0.0
        %664 = vmatpush1.msra.mxu0 0.0
        %665 = vmatprep.subr.mxu0 0.0
        %666 = vmatpush1.msra.mxu0 0.0
        %667 = vmatprep.subr.mxu0 0.0
        %668 = vmatpush1.msra.mxu0 0.0
        %669 = vmatprep.subr.mxu0 0.0
        %670 = vmatpush1.msra.mxu0 0.0
        %671 = vmatprep.subr.mxu0 0.0
        %672 = vmatpush1.msra.mxu0 0.0
        %673 = vmatprep.subr.mxu0 0.0
        %674 = vmatpush1.msra.mxu0 0.0
        %675 = vmatprep.subr.mxu0 0.0
        %676 = vmatpush1.msra.mxu0 0.0
        %677 = vmatprep.mubr.f32.mxu0 0.0
        %678 = vmatmul.mubr.f32.gmra.mrb[0].mxu0 %v607
        %v679 = vpop.f32.mrb[0].mxu0
        %v680 = vadd.f32 0.0, %v679
        %v681 = vpop.f32.mrb[0].mxu0
        %v682 = vadd.f32 0.0, %v681
        %683 = vdwg.mxu0
        %v684 = vadd.f32 %v595, %v680
        %v685 = vadd.f32 %v596, %v682
        %686 = vrot.lane.b32.xlu0 %v248, 106
        %v687 = vpop.permute.xlu0 %686
        %688 = vrot.lane.b32.xlu0 %v252, 106
        %v689 = vpop.permute.xlu0 %688
        %690 = vrot.lane.b32.xlu0 %v249, 106
        %v691 = vpop.permute.xlu0 %690
        %vm692 = vcmask 867328
        %v693 = vsel %vm692, %v687, %v689
        %v694 = vsel %vm692, %v689, %v691
        %v696 = vsel %vm217, %v244, 0
        %v698 = vsel %vm265, %v693, 0
        %v700 = vsel %vm265, %v694, 0
        %702 = vmatprep.subr.mxu0 %v700
        %703 = vmatpush1.msra.mxu0 %v698
        %704 = vmatprep.subr.mxu0 0.0
        %705 = vmatpush1.msra.mxu0 0.0
        %706 = vmatprep.subr.mxu0 0.0
        %707 = vmatpush1.msra.mxu0 0.0
        %708 = vmatprep.subr.mxu0 0.0
        %709 = vmatpush1.msra.mxu0 0.0
        %710 = vmatprep.subr.mxu0 0.0
        %711 = vmatpush1.msra.mxu0 0.0
        %712 = vmatprep.subr.mxu0 0.0
        %713 = vmatpush1.msra.mxu0 0.0
        %714 = vmatprep.subr.mxu0 0.0
        %715 = vmatpush1.msra.mxu0 0.0
        %716 = vmatprep.subr.mxu0 0.0
        %717 = vmatpush1.msra.mxu0 0.0
        %718 = vmatprep.subr.mxu0 0.0
        %719 = vmatpush1.msra.mxu0 0.0
        %720 = vmatprep.subr.mxu0 0.0
        %721 = vmatpush1.msra.mxu0 0.0
        %722 = vmatprep.subr.mxu0 0.0
        %723 = vmatpush1.msra.mxu0 0.0
        %724 = vmatprep.subr.mxu0 0.0
        %725 = vmatpush1.msra.mxu0 0.0
        %726 = vmatprep.subr.mxu0 0.0
        %727 = vmatpush1.msra.mxu0 0.0
        %728 = vmatprep.subr.mxu0 0.0
        %729 = vmatpush1.msra.mxu0 0.0
        %730 = vmatprep.subr.mxu0 0.0
        %731 = vmatpush1.msra.mxu0 0.0
        %732 = vmatprep.subr.mxu0 0.0
        %733 = vmatpush1.msra.mxu0 0.0
        %734 = vmatprep.subr.mxu0 0.0
        %735 = vmatpush1.msra.mxu0 0.0
        %736 = vmatprep.subr.mxu0 0.0
        %737 = vmatpush1.msra.mxu0 0.0
        %738 = vmatprep.subr.mxu0 0.0
        %739 = vmatpush1.msra.mxu0 0.0
        %740 = vmatprep.subr.mxu0 0.0
        %741 = vmatpush1.msra.mxu0 0.0
        %742 = vmatprep.subr.mxu0 0.0
        %743 = vmatpush1.msra.mxu0 0.0
        %744 = vmatprep.subr.mxu0 0.0
        %745 = vmatpush1.msra.mxu0 0.0
        %746 = vmatprep.subr.mxu0 0.0
        %747 = vmatpush1.msra.mxu0 0.0
        %748 = vmatprep.subr.mxu0 0.0
        %749 = vmatpush1.msra.mxu0 0.0
        %750 = vmatprep.subr.mxu0 0.0
        %751 = vmatpush1.msra.mxu0 0.0
        %752 = vmatprep.subr.mxu0 0.0
        %753 = vmatpush1.msra.mxu0 0.0
        %754 = vmatprep.subr.mxu0 0.0
        %755 = vmatpush1.msra.mxu0 0.0
        %756 = vmatprep.subr.mxu0 0.0
        %757 = vmatpush1.msra.mxu0 0.0
        %758 = vmatprep.subr.mxu0 0.0
        %759 = vmatpush1.msra.mxu0 0.0
        %760 = vmatprep.subr.mxu0 0.0
        %761 = vmatpush1.msra.mxu0 0.0
        %762 = vmatprep.subr.mxu0 0.0
        %763 = vmatpush1.msra.mxu0 0.0
        %764 = vmatprep.subr.mxu0 0.0
        %765 = vmatpush1.msra.mxu0 0.0
        %766 = vmatprep.mubr.f32.mxu0 0.0
        %767 = vmatmul.mubr.f32.gmra.mrb[0].mxu0 %v696
        %v768 = vpop.f32.mrb[0].mxu0
        %v769 = vadd.f32 0.0, %v768
        %v770 = vpop.f32.mrb[0].mxu0
        %v771 = vadd.f32 0.0, %v770
        %772 = vdwg.mxu0
        %v773 = vadd.f32 %v684, %v769
        %v774 = vadd.f32 %v685, %v771
        %775 = vrot.lane.b32.xlu0 %v248, 88
        %v776 = vpop.permute.xlu0 %775
        %777 = vrot.lane.b32.xlu0 %v252, 88
        %v778 = vpop.permute.xlu0 %777
        %779 = vrot.lane.b32.xlu0 %v249, 88
        %v780 = vpop.permute.xlu0 %779
        %vm781 = vcmask 719872
        %v782 = vsel %vm781, %v776, %v778
        %v783 = vsel %vm781, %v778, %v780
        %v785 = vsel %vm217, %v245, 0
        %v787 = vsel %vm265, %v782, 0
        %v789 = vsel %vm265, %v783, 0
        %791 = vmatprep.subr.mxu0 %v789
        %792 = vmatpush1.msra.mxu0 %v787
        %793 = vmatprep.subr.mxu0 0.0
        %794 = vmatpush1.msra.mxu0 0.0
        %795 = vmatprep.subr.mxu0 0.0
        %796 = vmatpush1.msra.mxu0 0.0
        %797 = vmatprep.subr.mxu0 0.0
        %798 = vmatpush1.msra.mxu0 0.0
        %799 = vmatprep.subr.mxu0 0.0
        %800 = vmatpush1.msra.mxu0 0.0
        %801 = vmatprep.subr.mxu0 0.0
        %802 = vmatpush1.msra.mxu0 0.0
        %803 = vmatprep.subr.mxu0 0.0
        %804 = vmatpush1.msra.mxu0 0.0
        %805 = vmatprep.subr.mxu0 0.0
        %806 = vmatpush1.msra.mxu0 0.0
        %807 = vmatprep.subr.mxu0 0.0
        %808 = vmatpush1.msra.mxu0 0.0
        %809 = vmatprep.subr.mxu0 0.0
        %810 = vmatpush1.msra.mxu0 0.0
        %811 = vmatprep.subr.mxu0 0.0
        %812 = vmatpush1.msra.mxu0 0.0
        %813 = vmatprep.subr.mxu0 0.0
        %814 = vmatpush1.msra.mxu0 0.0
        %815 = vmatprep.subr.mxu0 0.0
        %816 = vmatpush1.msra.mxu0 0.0
        %817 = vmatprep.subr.mxu0 0.0
        %818 = vmatpush1.msra.mxu0 0.0
        %819 = vmatprep.subr.mxu0 0.0
        %820 = vmatpush1.msra.mxu0 0.0
        %821 = vmatprep.subr.mxu0 0.0
        %822 = vmatpush1.msra.mxu0 0.0
        %823 = vmatprep.subr.mxu0 0.0
        %824 = vmatpush1.msra.mxu0 0.0
        %825 = vmatprep.subr.mxu0 0.0
        %826 = vmatpush1.msra.mxu0 0.0
        %827 = vmatprep.subr.mxu0 0.0
        %828 = vmatpush1.msra.mxu0 0.0
        %829 = vmatprep.subr.mxu0 0.0
        %830 = vmatpush1.msra.mxu0 0.0
        %831 = vmatprep.subr.mxu0 0.0
        %832 = vmatpush1.msra.mxu0 0.0
        %833 = vmatprep.subr.mxu0 0.0
        %834 = vmatpush1.msra.mxu0 0.0
        %835 = vmatprep.subr.mxu0 0.0
        %836 = vmatpush1.msra.mxu0 0.0
        %837 = vmatprep.subr.mxu0 0.0
        %838 = vmatpush1.msra.mxu0 0.0
        %839 = vmatprep.subr.mxu0 0.0
        %840 = vmatpush1.msra.mxu0 0.0
        %841 = vmatprep.subr.mxu0 0.0
        %842 = vmatpush1.msra.mxu0 0.0
        %843 = vmatprep.subr.mxu0 0.0
        %844 = vmatpush1.msra.mxu0 0.0
        %845 = vmatprep.subr.mxu0 0.0
        %846 = vmatpush1.msra.mxu0 0.0
        %847 = vmatprep.subr.mxu0 0.0
        %848 = vmatpush1.msra.mxu0 0.0
        %849 = vmatprep.subr.mxu0 0.0
        %850 = vmatpush1.msra.mxu0 0.0
        %851 = vmatprep.subr.mxu0 0.0
        %852 = vmatpush1.msra.mxu0 0.0
        %853 = vmatprep.subr.mxu0 0.0
        %854 = vmatpush1.msra.mxu0 0.0
        %855 = vmatprep.mubr.f32.mxu0 0.0
        %856 = vmatmul.mubr.f32.gmra.mrb[0].mxu0 %v785
        %v857 = vpop.f32.mrb[0].mxu0
        %v858 = vadd.f32 0.0, %v857
        %v859 = vpop.f32.mrb[0].mxu0
        %v860 = vadd.f32 0.0, %v859
        %861 = vdwg.mxu0
        %v862 = vadd.f32 %v773, %v858
        %v863 = vadd.f32 %v774, %v860
        %864 = vrot.lane.b32.xlu0 %v248, 87
        %v865 = vpop.permute.xlu0 %864
        %866 = vrot.lane.b32.xlu0 %v252, 87
        %v867 = vpop.permute.xlu0 %866
        %868 = vrot.lane.b32.xlu0 %v249, 87
        %v869 = vpop.permute.xlu0 %868
        %vm870 = vcmask 711680
        %v871 = vsel %vm870, %v865, %v867
        %v872 = vsel %vm870, %v867, %v869
        %v874 = vsel %vm217, %v246, 0
        %v876 = vsel %vm265, %v871, 0
        %v878 = vsel %vm265, %v872, 0
        %880 = vmatprep.subr.mxu0 %v878
        %881 = vmatpush1.msra.mxu0 %v876
        %882 = vmatprep.subr.mxu0 0.0
        %883 = vmatpush1.msra.mxu0 0.0
        %884 = vmatprep.subr.mxu0 0.0
        %885 = vmatpush1.msra.mxu0 0.0
        %886 = vmatprep.subr.mxu0 0.0
        %887 = vmatpush1.msra.mxu0 0.0
        %888 = vmatprep.subr.mxu0 0.0
        %889 = vmatpush1.msra.mxu0 0.0
        %890 = vmatprep.subr.mxu0 0.0
        %891 = vmatpush1.msra.mxu0 0.0
        %892 = vmatprep.subr.mxu0 0.0
        %893 = vmatpush1.msra.mxu0 0.0
        %894 = vmatprep.subr.mxu0 0.0
        %895 = vmatpush1.msra.mxu0 0.0
        %896 = vmatprep.subr.mxu0 0.0
        %897 = vmatpush1.msra.mxu0 0.0
        %898 = vmatprep.subr.mxu0 0.0
        %899 = vmatpush1.msra.mxu0 0.0
        %900 = vmatprep.subr.mxu0 0.0
        %901 = vmatpush1.msra.mxu0 0.0
        %902 = vmatprep.subr.mxu0 0.0
        %903 = vmatpush1.msra.mxu0 0.0
        %904 = vmatprep.subr.mxu0 0.0
        %905 = vmatpush1.msra.mxu0 0.0
        %906 = vmatprep.subr.mxu0 0.0
        %907 = vmatpush1.msra.mxu0 0.0
        %908 = vmatprep.subr.mxu0 0.0
        %909 = vmatpush1.msra.mxu0 0.0
        %910 = vmatprep.subr.mxu0 0.0
        %911 = vmatpush1.msra.mxu0 0.0
        %912 = vmatprep.subr.mxu0 0.0
        %913 = vmatpush1.msra.mxu0 0.0
        %914 = vmatprep.subr.mxu0 0.0
        %915 = vmatpush1.msra.mxu0 0.0
        %916 = vmatprep.subr.mxu0 0.0
        %917 = vmatpush1.msra.mxu0 0.0
        %918 = vmatprep.subr.mxu0 0.0
        %919 = vmatpush1.msra.mxu0 0.0
        %920 = vmatprep.subr.mxu0 0.0
        %921 = vmatpush1.msra.mxu0 0.0
        %922 = vmatprep.subr.mxu0 0.0
        %923 = vmatpush1.msra.mxu0 0.0
        %924 = vmatprep.subr.mxu0 0.0
        %925 = vmatpush1.msra.mxu0 0.0
        %926 = vmatprep.subr.mxu0 0.0
        %927 = vmatpush1.msra.mxu0 0.0
        %928 = vmatprep.subr.mxu0 0.0
        %929 = vmatpush1.msra.mxu0 0.0
        %930 = vmatprep.subr.mxu0 0.0
        %931 = vmatpush1.msra.mxu0 0.0
        %932 = vmatprep.subr.mxu0 0.0
        %933 = vmatpush1.msra.mxu0 0.0
        %934 = vmatprep.subr.mxu0 0.0
        %935 = vmatpush1.msra.mxu0 0.0
        %936 = vmatprep.subr.mxu0 0.0
        %937 = vmatpush1.msra.mxu0 0.0
        %938 = vmatprep.subr.mxu0 0.0
        %939 = vmatpush1.msra.mxu0 0.0
        %940 = vmatprep.subr.mxu0 0.0
        %941 = vmatpush1.msra.mxu0 0.0
        %942 = vmatprep.subr.mxu0 0.0
        %943 = vmatpush1.msra.mxu0 0.0
        %944 = vmatprep.mubr.f32.mxu0 0.0
        %945 = vmatmul.mubr.f32.gmra.mrb[0].mxu0 %v874
        %v946 = vpop.f32.mrb[0].mxu0
        %v947 = vadd.f32 0.0, %v946
        %v948 = vpop.f32.mrb[0].mxu0
        %v949 = vadd.f32 0.0, %v948
        %950 = vdwg.mxu0
        %v951 = vadd.f32 %v862, %v947
        %v952 = vadd.f32 %v863, %v949
        %953 = vrot.lane.b32.xlu0 %v248, 86
        %v954 = vpop.permute.xlu0 %953
        %955 = vrot.lane.b32.xlu0 %v252, 86
        %v956 = vpop.permute.xlu0 %955
        %957 = vrot.lane.b32.xlu0 %v249, 86
        %v958 = vpop.permute.xlu0 %957
        %vm959 = vcmask 703488
        %v960 = vsel %vm959, %v954, %v956
        %v961 = vsel %vm959, %v956, %v958
        %v963 = vsel %vm217, %v247, 0
        %v965 = vsel %vm265, %v960, 0
        %v967 = vsel %vm265, %v961, 0
        %969 = vmatprep.subr.mxu0 %v967
        %970 = vmatpush1.msra.mxu0 %v965
        %971 = vmatprep.subr.mxu0 0.0
        %972 = vmatpush1.msra.mxu0 0.0
        %973 = vmatprep.subr.mxu0 0.0
        %974 = vmatpush1.msra.mxu0 0.0
        %975 = vmatprep.subr.mxu0 0.0
        %976 = vmatpush1.msra.mxu0 0.0
        %977 = vmatprep.subr.mxu0 0.0
        %978 = vmatpush1.msra.mxu0 0.0
        %979 = vmatprep.subr.mxu0 0.0
        %980 = vmatpush1.msra.mxu0 0.0
        %981 = vmatprep.subr.mxu0 0.0
        %982 = vmatpush1.msra.mxu0 0.0
        %983 = vmatprep.subr.mxu0 0.0
        %984 = vmatpush1.msra.mxu0 0.0
        %985 = vmatprep.subr.mxu0 0.0
        %986 = vmatpush1.msra.mxu0 0.0
        %987 = vmatprep.subr.mxu0 0.0
        %988 = vmatpush1.msra.mxu0 0.0
        %989 = vmatprep.subr.mxu0 0.0
        %990 = vmatpush1.msra.mxu0 0.0
        %991 = vmatprep.subr.mxu0 0.0
        %992 = vmatpush1.msra.mxu0 0.0
        %993 = vmatprep.subr.mxu0 0.0
        %994 = vmatpush1.msra.mxu0 0.0
        %995 = vmatprep.subr.mxu0 0.0
        %996 = vmatpush1.msra.mxu0 0.0
        %997 = vmatprep.subr.mxu0 0.0
        %998 = vmatpush1.msra.mxu0 0.0
        %999 = vmatprep.subr.mxu0 0.0
        %1000 = vmatpush1.msra.mxu0 0.0
        %1001 = vmatprep.subr.mxu0 0.0
        %1002 = vmatpush1.msra.mxu0 0.0
        %1003 = vmatprep.subr.mxu0 0.0
        %1004 = vmatpush1.msra.mxu0 0.0
        %1005 = vmatprep.subr.mxu0 0.0
        %1006 = vmatpush1.msra.mxu0 0.0
        %1007 = vmatprep.subr.mxu0 0.0
        %1008 = vmatpush1.msra.mxu0 0.0
        %1009 = vmatprep.subr.mxu0 0.0
        %1010 = vmatpush1.msra.mxu0 0.0
        %1011 = vmatprep.subr.mxu0 0.0
        %1012 = vmatpush1.msra.mxu0 0.0
        %1013 = vmatprep.subr.mxu0 0.0
        %1014 = vmatpush1.msra.mxu0 0.0
        %1015 = vmatprep.subr.mxu0 0.0
        %1016 = vmatpush1.msra.mxu0 0.0
        %1017 = vmatprep.subr.mxu0 0.0
        %1018 = vmatpush1.msra.mxu0 0.0
        %1019 = vmatprep.subr.mxu0 0.0
        %1020 = vmatpush1.msra.mxu0 0.0
        %1021 = vmatprep.subr.mxu0 0.0
        %1022 = vmatpush1.msra.mxu0 0.0
        %1023 = vmatprep.subr.mxu0 0.0
        %1024 = vmatpush1.msra.mxu0 0.0
        %1025 = vmatprep.subr.mxu0 0.0
        %1026 = vmatpush1.msra.mxu0 0.0
        %1027 = vmatprep.subr.mxu0 0.0
        %1028 = vmatpush1.msra.mxu0 0.0
        %1029 = vmatprep.subr.mxu0 0.0
        %1030 = vmatpush1.msra.mxu0 0.0
        %1031 = vmatprep.subr.mxu0 0.0
        %1032 = vmatpush1.msra.mxu0 0.0
        %1033 = vmatprep.mubr.f32.mxu0 0.0
        %1034 = vmatmul.mubr.f32.gmra.mrb[0].mxu0 %v963
        %v1035 = vpop.f32.mrb[0].mxu0
        %v1036 = vadd.f32 0.0, %v1035
        %v1037 = vpop.f32.mrb[0].mxu0
        %v1038 = vadd.f32 0.0, %v1037
        %1039 = vdwg.mxu0
        %v1040 = vadd.f32 %v951, %v1036
        %v1041 = vadd.f32 %v952, %v1038
        %1042 = vst [vmem:[%s174] sm:$0xff] %v1040
        %1043 = vst [vmem:[%s174 + $0x8] sm:$0xff] %v1041
        %v1044 = vld [vmem:[%s182 + $0x8] sm:$0xff]
        %v1045 = vld [vmem:[%s182 + $0x10] sm:$0xf]
        %v1048 = vcombine.high %v1044, %v1044
        %1049 = vrot.lane.b32.xlu0 %v1044, 127
        %v1050 = vpop.permute.xlu0 %1049
        %1051 = vrot.lane.b32.xlu0 %v1048, 127
        %v1052 = vpop.permute.xlu0 %1051
        %1053 = vrot.lane.b32.xlu0 %v1045, 127
        %v1054 = vpop.permute.xlu0 %1053
        %v1055 = vsel %vm259, %v1050, %v1052
        %v1056 = vsel %vm259, %v1052, %v1054
        %v1057 = vsel %vm265, %v1055, 0
        %v1059 = vsel %vm265, %v1056, 0
        %1061 = vmatprep.subr.mxu0 %v1059
        %1062 = vmatpush1.msra.mxu0 %v1057
        %1063 = vmatprep.subr.mxu0 0.0
        %1064 = vmatpush1.msra.mxu0 0.0
        %1065 = vmatprep.subr.mxu0 0.0
        %1066 = vmatpush1.msra.mxu0 0.0
        %1067 = vmatprep.subr.mxu0 0.0
        %1068 = vmatpush1.msra.mxu0 0.0
        %1069 = vmatprep.subr.mxu0 0.0
        %1070 = vmatpush1.msra.mxu0 0.0
        %1071 = vmatprep.subr.mxu0 0.0
        %1072 = vmatpush1.msra.mxu0 0.0
        %1073 = vmatprep.subr.mxu0 0.0
        %1074 = vmatpush1.msra.mxu0 0.0
        %1075 = vmatprep.subr.mxu0 0.0
        %1076 = vmatpush1.msra.mxu0 0.0
        %1077 = vmatprep.subr.mxu0 0.0
        %1078 = vmatpush1.msra.mxu0 0.0
        %1079 = vmatprep.subr.mxu0 0.0
        %1080 = vmatpush1.msra.mxu0 0.0
        %1081 = vmatprep.subr.mxu0 0.0
        %1082 = vmatpush1.msra.mxu0 0.0
        %1083 = vmatprep.subr.mxu0 0.0
        %1084 = vmatpush1.msra.mxu0 0.0
        %1085 = vmatprep.subr.mxu0 0.0
        %1086 = vmatpush1.msra.mxu0 0.0
        %1087 = vmatprep.subr.mxu0 0.0
        %1088 = vmatpush1.msra.mxu0 0.0
        %1089 = vmatprep.subr.mxu0 0.0
        %1090 = vmatpush1.msra.mxu0 0.0
        %1091 = vmatprep.subr.mxu0 0.0
        %1092 = vmatpush1.msra.mxu0 0.0
        %1093 = vmatprep.subr.mxu0 0.0
        %1094 = vmatpush1.msra.mxu0 0.0
        %1095 = vmatprep.subr.mxu0 0.0
        %1096 = vmatpush1.msra.mxu0 0.0
        %1097 = vmatprep.subr.mxu0 0.0
        %1098 = vmatpush1.msra.mxu0 0.0
        %1099 = vmatprep.subr.mxu0 0.0
        %1100 = vmatpush1.msra.mxu0 0.0
        %1101 = vmatprep.subr.mxu0 0.0
        %1102 = vmatpush1.msra.mxu0 0.0
        %1103 = vmatprep.subr.mxu0 0.0
        %1104 = vmatpush1.msra.mxu0 0.0
        %1105 = vmatprep.subr.mxu0 0.0
        %1106 = vmatpush1.msra.mxu0 0.0
        %1107 = vmatprep.subr.mxu0 0.0
        %1108 = vmatpush1.msra.mxu0 0.0
        %1109 = vmatprep.subr.mxu0 0.0
        %1110 = vmatpush1.msra.mxu0 0.0
        %1111 = vmatprep.subr.mxu0 0.0
        %1112 = vmatpush1.msra.mxu0 0.0
        %1113 = vmatprep.subr.mxu0 0.0
        %1114 = vmatpush1.msra.mxu0 0.0
        %1115 = vmatprep.subr.mxu0 0.0
        %1116 = vmatpush1.msra.mxu0 0.0
        %1117 = vmatprep.subr.mxu0 0.0
        %1118 = vmatpush1.msra.mxu0 0.0
        %1119 = vmatprep.subr.mxu0 0.0
        %1120 = vmatpush1.msra.mxu0 0.0
        %1121 = vmatprep.subr.mxu0 0.0
        %1122 = vmatpush1.msra.mxu0 0.0
        %1123 = vmatprep.subr.mxu0 0.0
        %1124 = vmatpush1.msra.mxu0 0.0
        %1125 = vmatprep.mubr.f32.mxu0 0.0
        %1126 = vmatmul.mubr.f32.gmra.mrb[0].mxu0 %v263
        %v1127 = vpop.f32.mrb[0].mxu0
        %v1128 = vadd.f32 0.0, %v1127
        %v1129 = vpop.f32.mrb[0].mxu0
        %v1130 = vadd.f32 0.0, %v1129
        %1131 = vdwg.mxu0
        %v1132 = vsel %vm265, %v1044, 0
        %v1134 = vsel %vm265, %v1048, 0
        %1136 = vmatprep.subr.mxu0 %v1134
        %1137 = vmatpush1.msra.mxu0 %v1132
        %1138 = vmatprep.subr.mxu0 0.0
        %1139 = vmatpush1.msra.mxu0 0.0
        %1140 = vmatprep.subr.mxu0 0.0
        %1141 = vmatpush1.msra.mxu0 0.0
        %1142 = vmatprep.subr.mxu0 0.0
        %1143 = vmatpush1.msra.mxu0 0.0
        %1144 = vmatprep.subr.mxu0 0.0
        %1145 = vmatpush1.msra.mxu0 0.0
        %1146 = vmatprep.subr.mxu0 0.0
        %1147 = vmatpush1.msra.mxu0 0.0
        %1148 = vmatprep.subr.mxu0 0.0
        %1149 = vmatpush1.msra.mxu0 0.0
        %1150 = vmatprep.subr.mxu0 0.0
        %1151 = vmatpush1.msra.mxu0 0.0
        %1152 = vmatprep.subr.mxu0 0.0
        %1153 = vmatpush1.msra.mxu0 0.0
        %1154 = vmatprep.subr.mxu0 0.0
        %1155 = vmatpush1.msra.mxu0 0.0
        %1156 = vmatprep.subr.mxu0 0.0
        %1157 = vmatpush1.msra.mxu0 0.0
        %1158 = vmatprep.subr.mxu0 0.0
        %1159 = vmatpush1.msra.mxu0 0.0
        %1160 = vmatprep.subr.mxu0 0.0
        %1161 = vmatpush1.msra.mxu0 0.0
        %1162 = vmatprep.subr.mxu0 0.0
        %1163 = vmatpush1.msra.mxu0 0.0
        %1164 = vmatprep.subr.mxu0 0.0
        %1165 = vmatpush1.msra.mxu0 0.0
        %1166 = vmatprep.subr.mxu0 0.0
        %1167 = vmatpush1.msra.mxu0 0.0
        %1168 = vmatprep.subr.mxu0 0.0
        %1169 = vmatpush1.msra.mxu0 0.0
        %1170 = vmatprep.subr.mxu0 0.0
        %1171 = vmatpush1.msra.mxu0 0.0
        %1172 = vmatprep.subr.mxu0 0.0
        %1173 = vmatpush1.msra.mxu0 0.0
        %1174 = vmatprep.subr.mxu0 0.0
        %1175 = vmatpush1.msra.mxu0 0.0
        %1176 = vmatprep.subr.mxu0 0.0
        %1177 = vmatpush1.msra.mxu0 0.0
        %1178 = vmatprep.subr.mxu0 0.0
        %1179 = vmatpush1.msra.mxu0 0.0
        %1180 = vmatprep.subr.mxu0 0.0
        %1181 = vmatpush1.msra.mxu0 0.0
        %1182 = vmatprep.subr.mxu0 0.0
        %1183 = vmatpush1.msra.mxu0 0.0
        %1184 = vmatprep.subr.mxu0 0.0
        %1185 = vmatpush1.msra.mxu0 0.0
        %1186 = vmatprep.subr.mxu0 0.0
        %1187 = vmatpush1.msra.mxu0 0.0
        %1188 = vmatprep.subr.mxu0 0.0
        %1189 = vmatpush1.msra.mxu0 0.0
        %1190 = vmatprep.subr.mxu0 0.0
        %1191 = vmatpush1.msra.mxu0 0.0
        %1192 = vmatprep.subr.mxu0 0.0
        %1193 = vmatpush1.msra.mxu0 0.0
        %1194 = vmatprep.subr.mxu0 0.0
        %1195 = vmatpush1.msra.mxu0 0.0
        %1196 = vmatprep.subr.mxu0 0.0
        %1197 = vmatpush1.msra.mxu0 0.0
        %1198 = vmatprep.subr.mxu0 0.0
        %1199 = vmatpush1.msra.mxu0 0.0
        %1200 = vmatprep.mubr.f32.mxu0 0.0
        %1201 = vmatmul.mubr.f32.gmra.mrb[0].mxu0 %v342
        %v1202 = vpop.f32.mrb[0].mxu0
        %v1203 = vadd.f32 %v1128, %v1202
        %v1204 = vpop.f32.mrb[0].mxu0
        %v1205 = vadd.f32 %v1130, %v1204
        %1206 = vdwg.mxu0
        %1207 = vrot.lane.b32.xlu0 %v1044, 126
        %v1208 = vpop.permute.xlu0 %1207
        %1209 = vrot.lane.b32.xlu0 %v1048, 126
        %v1210 = vpop.permute.xlu0 %1209
        %1211 = vrot.lane.b32.xlu0 %v1045, 126
        %v1212 = vpop.permute.xlu0 %1211
        %v1213 = vsel %vm425, %v1208, %v1210
        %v1214 = vsel %vm425, %v1210, %v1212
        %v1215 = vsel %vm265, %v1213, 0
        %v1217 = vsel %vm265, %v1214, 0
        %1219 = vmatprep.subr.mxu0 %v1217
        %1220 = vmatpush1.msra.mxu0 %v1215
        %1221 = vmatprep.subr.mxu0 0.0
        %1222 = vmatpush1.msra.mxu0 0.0
        %1223 = vmatprep.subr.mxu0 0.0
        %1224 = vmatpush1.msra.mxu0 0.0
        %1225 = vmatprep.subr.mxu0 0.0
        %1226 = vmatpush1.msra.mxu0 0.0
        %1227 = vmatprep.subr.mxu0 0.0
        %1228 = vmatpush1.msra.mxu0 0.0
        %1229 = vmatprep.subr.mxu0 0.0
        %1230 = vmatpush1.msra.mxu0 0.0
        %1231 = vmatprep.subr.mxu0 0.0
        %1232 = vmatpush1.msra.mxu0 0.0
        %1233 = vmatprep.subr.mxu0 0.0
        %1234 = vmatpush1.msra.mxu0 0.0
        %1235 = vmatprep.subr.mxu0 0.0
        %1236 = vmatpush1.msra.mxu0 0.0
        %1237 = vmatprep.subr.mxu0 0.0
        %1238 = vmatpush1.msra.mxu0 0.0
        %1239 = vmatprep.subr.mxu0 0.0
        %1240 = vmatpush1.msra.mxu0 0.0
        %1241 = vmatprep.subr.mxu0 0.0
        %1242 = vmatpush1.msra.mxu0 0.0
        %1243 = vmatprep.subr.mxu0 0.0
        %1244 = vmatpush1.msra.mxu0 0.0
        %1245 = vmatprep.subr.mxu0 0.0
        %1246 = vmatpush1.msra.mxu0 0.0
        %1247 = vmatprep.subr.mxu0 0.0
        %1248 = vmatpush1.msra.mxu0 0.0
        %1249 = vmatprep.subr.mxu0 0.0
        %1250 = vmatpush1.msra.mxu0 0.0
        %1251 = vmatprep.subr.mxu0 0.0
        %1252 = vmatpush1.msra.mxu0 0.0
        %1253 = vmatprep.subr.mxu0 0.0
        %1254 = vmatpush1.msra.mxu0 0.0
        %1255 = vmatprep.subr.mxu0 0.0
        %1256 = vmatpush1.msra.mxu0 0.0
        %1257 = vmatprep.subr.mxu0 0.0
        %1258 = vmatpush1.msra.mxu0 0.0
        %1259 = vmatprep.subr.mxu0 0.0
        %1260 = vmatpush1.msra.mxu0 0.0
        %1261 = vmatprep.subr.mxu0 0.0
        %1262 = vmatpush1.msra.mxu0 0.0
        %1263 = vmatprep.subr.mxu0 0.0
        %1264 = vmatpush1.msra.mxu0 0.0
        %1265 = vmatprep.subr.mxu0 0.0
        %1266 = vmatpush1.msra.mxu0 0.0
        %1267 = vmatprep.subr.mxu0 0.0
        %1268 = vmatpush1.msra.mxu0 0.0
        %1269 = vmatprep.subr.mxu0 0.0
        %1270 = vmatpush1.msra.mxu0 0.0
        %1271 = vmatprep.subr.mxu0 0.0
        %1272 = vmatpush1.msra.mxu0 0.0
        %1273 = vmatprep.subr.mxu0 0.0
        %1274 = vmatpush1.msra.mxu0 0.0
        %1275 = vmatprep.subr.mxu0 0.0
        %1276 = vmatpush1.msra.mxu0 0.0
        %1277 = vmatprep.subr.mxu0 0.0
        %1278 = vmatpush1.msra.mxu0 0.0
        %1279 = vmatprep.subr.mxu0 0.0
        %1280 = vmatpush1.msra.mxu0 0.0
        %1281 = vmatprep.subr.mxu0 0.0
        %1282 = vmatpush1.msra.mxu0 0.0
        %1283 = vmatprep.mubr.f32.mxu0 0.0
        %1284 = vmatmul.mubr.f32.gmra.mrb[0].mxu0 %v429
        %v1285 = vpop.f32.mrb[0].mxu0
        %v1286 = vadd.f32 0.0, %v1285
        %v1287 = vpop.f32.mrb[0].mxu0
        %v1288 = vadd.f32 0.0, %v1287
        %1289 = vdwg.mxu0
        %v1290 = vadd.f32 %v1203, %v1286
        %v1291 = vadd.f32 %v1205, %v1288
        %1292 = vrot.lane.b32.xlu0 %v1044, 108
        %v1293 = vpop.permute.xlu0 %1292
        %1294 = vrot.lane.b32.xlu0 %v1048, 108
        %v1295 = vpop.permute.xlu0 %1294
        %1296 = vrot.lane.b32.xlu0 %v1045, 108
        %v1297 = vpop.permute.xlu0 %1296
        %v1298 = vsel %vm514, %v1293, %v1295
        %v1299 = vsel %vm514, %v1295, %v1297
        %v1300 = vsel %vm265, %v1298, 0
        %v1302 = vsel %vm265, %v1299, 0
        %1304 = vmatprep.subr.mxu0 %v1302
        %1305 = vmatpush1.msra.mxu0 %v1300
        %1306 = vmatprep.subr.mxu0 0.0
        %1307 = vmatpush1.msra.mxu0 0.0
        %1308 = vmatprep.subr.mxu0 0.0
        %1309 = vmatpush1.msra.mxu0 0.0
        %1310 = vmatprep.subr.mxu0 0.0
        %1311 = vmatpush1.msra.mxu0 0.0
        %1312 = vmatprep.subr.mxu0 0.0
        %1313 = vmatpush1.msra.mxu0 0.0
        %1314 = vmatprep.subr.mxu0 0.0
        %1315 = vmatpush1.msra.mxu0 0.0
        %1316 = vmatprep.subr.mxu0 0.0
        %1317 = vmatpush1.msra.mxu0 0.0
        %1318 = vmatprep.subr.mxu0 0.0
        %1319 = vmatpush1.msra.mxu0 0.0
        %1320 = vmatprep.subr.mxu0 0.0
        %1321 = vmatpush1.msra.mxu0 0.0
        %1322 = vmatprep.subr.mxu0 0.0
        %1323 = vmatpush1.msra.mxu0 0.0
        %1324 = vmatprep.subr.mxu0 0.0
        %1325 = vmatpush1.msra.mxu0 0.0
        %1326 = vmatprep.subr.mxu0 0.0
        %1327 = vmatpush1.msra.mxu0 0.0
        %1328 = vmatprep.subr.mxu0 0.0
        %1329 = vmatpush1.msra.mxu0 0.0
        %1330 = vmatprep.subr.mxu0 0.0
        %1331 = vmatpush1.msra.mxu0 0.0
        %1332 = vmatprep.subr.mxu0 0.0
        %1333 = vmatpush1.msra.mxu0 0.0
        %1334 = vmatprep.subr.mxu0 0.0
        %1335 = vmatpush1.msra.mxu0 0.0
        %1336 = vmatprep.subr.mxu0 0.0
        %1337 = vmatpush1.msra.mxu0 0.0
        %1338 = vmatprep.subr.mxu0 0.0
        %1339 = vmatpush1.msra.mxu0 0.0
        %1340 = vmatprep.subr.mxu0 0.0
        %1341 = vmatpush1.msra.mxu0 0.0
        %1342 = vmatprep.subr.mxu0 0.0
        %1343 = vmatpush1.msra.mxu0 0.0
        %1344 = vmatprep.subr.mxu0 0.0
        %1345 = vmatpush1.msra.mxu0 0.0
        %1346 = vmatprep.subr.mxu0 0.0
        %1347 = vmatpush1.msra.mxu0 0.0
        %1348 = vmatprep.subr.mxu0 0.0
        %1349 = vmatpush1.msra.mxu0 0.0
        %1350 = vmatprep.subr.mxu0 0.0
        %1351 = vmatpush1.msra.mxu0 0.0
        %1352 = vmatprep.subr.mxu0 0.0
        %1353 = vmatpush1.msra.mxu0 0.0
        %1354 = vmatprep.subr.mxu0 0.0
        %1355 = vmatpush1.msra.mxu0 0.0
        %1356 = vmatprep.subr.mxu0 0.0
        %1357 = vmatpush1.msra.mxu0 0.0
        %1358 = vmatprep.subr.mxu0 0.0
        %1359 = vmatpush1.msra.mxu0 0.0
        %1360 = vmatprep.subr.mxu0 0.0
        %1361 = vmatpush1.msra.mxu0 0.0
        %1362 = vmatprep.subr.mxu0 0.0
        %1363 = vmatpush1.msra.mxu0 0.0
        %1364 = vmatprep.subr.mxu0 0.0
        %1365 = vmatpush1.msra.mxu0 0.0
        %1366 = vmatprep.subr.mxu0 0.0
        %1367 = vmatpush1.msra.mxu0 0.0
        %1368 = vmatprep.mubr.f32.mxu0 0.0
        %1369 = vmatmul.mubr.f32.gmra.mrb[0].mxu0 %v518
        %v1370 = vpop.f32.mrb[0].mxu0
        %v1371 = vadd.f32 0.0, %v1370
        %v1372 = vpop.f32.mrb[0].mxu0
        %v1373 = vadd.f32 0.0, %v1372
        %1374 = vdwg.mxu0
        %v1375 = vadd.f32 %v1290, %v1371
        %v1376 = vadd.f32 %v1291, %v1373
        %1377 = vrot.lane.b32.xlu0 %v1044, 107
        %v1378 = vpop.permute.xlu0 %1377
        %1379 = vrot.lane.b32.xlu0 %v1048, 107
        %v1380 = vpop.permute.xlu0 %1379
        %1381 = vrot.lane.b32.xlu0 %v1045, 107
        %v1382 = vpop.permute.xlu0 %1381
        %v1383 = vsel %vm603, %v1378, %v1380
        %v1384 = vsel %vm603, %v1380, %v1382
        %v1385 = vsel %vm265, %v1383, 0
        %v1387 = vsel %vm265, %v1384, 0
        %1389 = vmatprep.subr.mxu0 %v1387
        %1390 = vmatpush1.msra.mxu0 %v1385
        %1391 = vmatprep.subr.mxu0 0.0
        %1392 = vmatpush1.msra.mxu0 0.0
        %1393 = vmatprep.subr.mxu0 0.0
        %1394 = vmatpush1.msra.mxu0 0.0
        %1395 = vmatprep.subr.mxu0 0.0
        %1396 = vmatpush1.msra.mxu0 0.0
        %1397 = vmatprep.subr.mxu0 0.0
        %1398 = vmatpush1.msra.mxu0 0.0
        %1399 = vmatprep.subr.mxu0 0.0
        %1400 = vmatpush1.msra.mxu0 0.0
        %1401 = vmatprep.subr.mxu0 0.0
        %1402 = vmatpush1.msra.mxu0 0.0
        %1403 = vmatprep.subr.mxu0 0.0
        %1404 = vmatpush1.msra.mxu0 0.0
        %1405 = vmatprep.subr.mxu0 0.0
        %1406 = vmatpush1.msra.mxu0 0.0
        %1407 = vmatprep.subr.mxu0 0.0
        %1408 = vmatpush1.msra.mxu0 0.0
        %1409 = vmatprep.subr.mxu0 0.0
        %1410 = vmatpush1.msra.mxu0 0.0
        %1411 = vmatprep.subr.mxu0 0.0
        %1412 = vmatpush1.msra.mxu0 0.0
        %1413 = vmatprep.subr.mxu0 0.0
        %1414 = vmatpush1.msra.mxu0 0.0
        %1415 = vmatprep.subr.mxu0 0.0
        %1416 = vmatpush1.msra.mxu0 0.0
        %1417 = vmatprep.subr.mxu0 0.0
        %1418 = vmatpush1.msra.mxu0 0.0
        %1419 = vmatprep.subr.mxu0 0.0
        %1420 = vmatpush1.msra.mxu0 0.0
        %1421 = vmatprep.subr.mxu0 0.0
        %1422 = vmatpush1.msra.mxu0 0.0
        %1423 = vmatprep.subr.mxu0 0.0
        %1424 = vmatpush1.msra.mxu0 0.0
        %1425 = vmatprep.subr.mxu0 0.0
        %1426 = vmatpush1.msra.mxu0 0.0
        %1427 = vmatprep.subr.mxu0 0.0
        %1428 = vmatpush1.msra.mxu0 0.0
        %1429 = vmatprep.subr.mxu0 0.0
        %1430 = vmatpush1.msra.mxu0 0.0
        %1431 = vmatprep.subr.mxu0 0.0
        %1432 = vmatpush1.msra.mxu0 0.0
        %1433 = vmatprep.subr.mxu0 0.0
        %1434 = vmatpush1.msra.mxu0 0.0
        %1435 = vmatprep.subr.mxu0 0.0
        %1436 = vmatpush1.msra.mxu0 0.0
        %1437 = vmatprep.subr.mxu0 0.0
        %1438 = vmatpush1.msra.mxu0 0.0
        %1439 = vmatprep.subr.mxu0 0.0
        %1440 = vmatpush1.msra.mxu0 0.0
        %1441 = vmatprep.subr.mxu0 0.0
        %1442 = vmatpush1.msra.mxu0 0.0
        %1443 = vmatprep.subr.mxu0 0.0
        %1444 = vmatpush1.msra.mxu0 0.0
        %1445 = vmatprep.subr.mxu0 0.0
        %1446 = vmatpush1.msra.mxu0 0.0
        %1447 = vmatprep.subr.mxu0 0.0
        %1448 = vmatpush1.msra.mxu0 0.0
        %1449 = vmatprep.subr.mxu0 0.0
        %1450 = vmatpush1.msra.mxu0 0.0
        %1451 = vmatprep.subr.mxu0 0.0
        %1452 = vmatpush1.msra.mxu0 0.0
        %1453 = vmatprep.mubr.f32.mxu0 0.0
        %1454 = vmatmul.mubr.f32.gmra.mrb[0].mxu0 %v607
        %v1455 = vpop.f32.mrb[0].mxu0
        %v1456 = vadd.f32 0.0, %v1455
        %v1457 = vpop.f32.mrb[0].mxu0
        %v1458 = vadd.f32 0.0, %v1457
        %1459 = vdwg.mxu0
        %v1460 = vadd.f32 %v1375, %v1456
        %v1461 = vadd.f32 %v1376, %v1458
        %1462 = vrot.lane.b32.xlu0 %v1044, 106
        %v1463 = vpop.permute.xlu0 %1462
        %1464 = vrot.lane.b32.xlu0 %v1048, 106
        %v1465 = vpop.permute.xlu0 %1464
        %1466 = vrot.lane.b32.xlu0 %v1045, 106
        %v1467 = vpop.permute.xlu0 %1466
        %v1468 = vsel %vm692, %v1463, %v1465
        %v1469 = vsel %vm692, %v1465, %v1467
        %v1470 = vsel %vm265, %v1468, 0
        %v1472 = vsel %vm265, %v1469, 0
        %1474 = vmatprep.subr.mxu0 %v1472
        %1475 = vmatpush1.msra.mxu0 %v1470
        %1476 = vmatprep.subr.mxu0 0.0
        %1477 = vmatpush1.msra.mxu0 0.0
        %1478 = vmatprep.subr.mxu0 0.0
        %1479 = vmatpush1.msra.mxu0 0.0
        %1480 = vmatprep.subr.mxu0 0.0
        %1481 = vmatpush1.msra.mxu0 0.0
        %1482 = vmatprep.subr.mxu0 0.0
        %1483 = vmatpush1.msra.mxu0 0.0
        %1484 = vmatprep.subr.mxu0 0.0
        %1485 = vmatpush1.msra.mxu0 0.0
        %1486 = vmatprep.subr.mxu0 0.0
        %1487 = vmatpush1.msra.mxu0 0.0
        %1488 = vmatprep.subr.mxu0 0.0
        %1489 = vmatpush1.msra.mxu0 0.0
        %1490 = vmatprep.subr.mxu0 0.0
        %1491 = vmatpush1.msra.mxu0 0.0
        %1492 = vmatprep.subr.mxu0 0.0
        %1493 = vmatpush1.msra.mxu0 0.0
        %1494 = vmatprep.subr.mxu0 0.0
        %1495 = vmatpush1.msra.mxu0 0.0
        %1496 = vmatprep.subr.mxu0 0.0
        %1497 = vmatpush1.msra.mxu0 0.0
        %1498 = vmatprep.subr.mxu0 0.0
        %1499 = vmatpush1.msra.mxu0 0.0
        %1500 = vmatprep.subr.mxu0 0.0
        %1501 = vmatpush1.msra.mxu0 0.0
        %1502 = vmatprep.subr.mxu0 0.0
        %1503 = vmatpush1.msra.mxu0 0.0
        %1504 = vmatprep.subr.mxu0 0.0
        %1505 = vmatpush1.msra.mxu0 0.0
        %1506 = vmatprep.subr.mxu0 0.0
        %1507 = vmatpush1.msra.mxu0 0.0
        %1508 = vmatprep.subr.mxu0 0.0
        %1509 = vmatpush1.msra.mxu0 0.0
        %1510 = vmatprep.subr.mxu0 0.0
        %1511 = vmatpush1.msra.mxu0 0.0
        %1512 = vmatprep.subr.mxu0 0.0
        %1513 = vmatpush1.msra.mxu0 0.0
        %1514 = vmatprep.subr.mxu0 0.0
        %1515 = vmatpush1.msra.mxu0 0.0
        %1516 = vmatprep.subr.mxu0 0.0
        %1517 = vmatpush1.msra.mxu0 0.0
        %1518 = vmatprep.subr.mxu0 0.0
        %1519 = vmatpush1.msra.mxu0 0.0
        %1520 = vmatprep.subr.mxu0 0.0
        %1521 = vmatpush1.msra.mxu0 0.0
        %1522 = vmatprep.subr.mxu0 0.0
        %1523 = vmatpush1.msra.mxu0 0.0
        %1524 = vmatprep.subr.mxu0 0.0
        %1525 = vmatpush1.msra.mxu0 0.0
        %1526 = vmatprep.subr.mxu0 0.0
        %1527 = vmatpush1.msra.mxu0 0.0
        %1528 = vmatprep.subr.mxu0 0.0
        %1529 = vmatpush1.msra.mxu0 0.0
        %1530 = vmatprep.subr.mxu0 0.0
        %1531 = vmatpush1.msra.mxu0 0.0
        %1532 = vmatprep.subr.mxu0 0.0
        %1533 = vmatpush1.msra.mxu0 0.0
        %1534 = vmatprep.subr.mxu0 0.0
        %1535 = vmatpush1.msra.mxu0 0.0
        %1536 = vmatprep.subr.mxu0 0.0
        %1537 = vmatpush1.msra.mxu0 0.0
        %1538 = vmatprep.mubr.f32.mxu0 0.0
        %1539 = vmatmul.mubr.f32.gmra.mrb[0].mxu0 %v696
        %v1540 = vpop.f32.mrb[0].mxu0
        %v1541 = vadd.f32 0.0, %v1540
        %v1542 = vpop.f32.mrb[0].mxu0
        %v1543 = vadd.f32 0.0, %v1542
        %1544 = vdwg.mxu0
        %v1545 = vadd.f32 %v1460, %v1541
        %v1546 = vadd.f32 %v1461, %v1543
        %1547 = vrot.lane.b32.xlu0 %v1044, 88
        %v1548 = vpop.permute.xlu0 %1547
        %1549 = vrot.lane.b32.xlu0 %v1048, 88
        %v1550 = vpop.permute.xlu0 %1549
        %1551 = vrot.lane.b32.xlu0 %v1045, 88
        %v1552 = vpop.permute.xlu0 %1551
        %v1553 = vsel %vm781, %v1548, %v1550
        %v1554 = vsel %vm781, %v1550, %v1552
        %v1555 = vsel %vm265, %v1553, 0
        %v1557 = vsel %vm265, %v1554, 0
        %1559 = vmatprep.subr.mxu0 %v1557
        %1560 = vmatpush1.msra.mxu0 %v1555
        %1561 = vmatprep.subr.mxu0 0.0
        %1562 = vmatpush1.msra.mxu0 0.0
        %1563 = vmatprep.subr.mxu0 0.0
        %1564 = vmatpush1.msra.mxu0 0.0
        %1565 = vmatprep.subr.mxu0 0.0
        %1566 = vmatpush1.msra.mxu0 0.0
        %1567 = vmatprep.subr.mxu0 0.0
        %1568 = vmatpush1.msra.mxu0 0.0
        %1569 = vmatprep.subr.mxu0 0.0
        %1570 = vmatpush1.msra.mxu0 0.0
        %1571 = vmatprep.subr.mxu0 0.0
        %1572 = vmatpush1.msra.mxu0 0.0
        %1573 = vmatprep.subr.mxu0 0.0
        %1574 = vmatpush1.msra.mxu0 0.0
        %1575 = vmatprep.subr.mxu0 0.0
        %1576 = vmatpush1.msra.mxu0 0.0
        %1577 = vmatprep.subr.mxu0 0.0
        %1578 = vmatpush1.msra.mxu0 0.0
        %1579 = vmatprep.subr.mxu0 0.0
        %1580 = vmatpush1.msra.mxu0 0.0
        %1581 = vmatprep.subr.mxu0 0.0
        %1582 = vmatpush1.msra.mxu0 0.0
        %1583 = vmatprep.subr.mxu0 0.0
        %1584 = vmatpush1.msra.mxu0 0.0
        %1585 = vmatprep.subr.mxu0 0.0
        %1586 = vmatpush1.msra.mxu0 0.0
        %1587 = vmatprep.subr.mxu0 0.0
        %1588 = vmatpush1.msra.mxu0 0.0
        %1589 = vmatprep.subr.mxu0 0.0
        %1590 = vmatpush1.msra.mxu0 0.0
        %1591 = vmatprep.subr.mxu0 0.0
        %1592 = vmatpush1.msra.mxu0 0.0
        %1593 = vmatprep.subr.mxu0 0.0
        %1594 = vmatpush1.msra.mxu0 0.0
        %1595 = vmatprep.subr.mxu0 0.0
        %1596 = vmatpush1.msra.mxu0 0.0
        %1597 = vmatprep.subr.mxu0 0.0
        %1598 = vmatpush1.msra.mxu0 0.0
        %1599 = vmatprep.subr.mxu0 0.0
        %1600 = vmatpush1.msra.mxu0 0.0
        %1601 = vmatprep.subr.mxu0 0.0
        %1602 = vmatpush1.msra.mxu0 0.0
        %1603 = vmatprep.subr.mxu0 0.0
        %1604 = vmatpush1.msra.mxu0 0.0
        %1605 = vmatprep.subr.mxu0 0.0
        %1606 = vmatpush1.msra.mxu0 0.0
        %1607 = vmatprep.subr.mxu0 0.0
        %1608 = vmatpush1.msra.mxu0 0.0
        %1609 = vmatprep.subr.mxu0 0.0
        %1610 = vmatpush1.msra.mxu0 0.0
        %1611 = vmatprep.subr.mxu0 0.0
        %1612 = vmatpush1.msra.mxu0 0.0
        %1613 = vmatprep.subr.mxu0 0.0
        %1614 = vmatpush1.msra.mxu0 0.0
        %1615 = vmatprep.subr.mxu0 0.0
        %1616 = vmatpush1.msra.mxu0 0.0
        %1617 = vmatprep.subr.mxu0 0.0
        %1618 = vmatpush1.msra.mxu0 0.0
        %1619 = vmatprep.subr.mxu0 0.0
        %1620 = vmatpush1.msra.mxu0 0.0
        %1621 = vmatprep.subr.mxu0 0.0
        %1622 = vmatpush1.msra.mxu0 0.0
        %1623 = vmatprep.mubr.f32.mxu0 0.0
        %1624 = vmatmul.mubr.f32.gmra.mrb[0].mxu0 %v785
        %v1625 = vpop.f32.mrb[0].mxu0
        %v1626 = vadd.f32 0.0, %v1625
        %v1627 = vpop.f32.mrb[0].mxu0
        %v1628 = vadd.f32 0.0, %v1627
        %1629 = vdwg.mxu0
        %v1630 = vadd.f32 %v1545, %v1626
        %v1631 = vadd.f32 %v1546, %v1628
        %1632 = vrot.lane.b32.xlu0 %v1044, 87
        %v1633 = vpop.permute.xlu0 %1632
        %1634 = vrot.lane.b32.xlu0 %v1048, 87
        %v1635 = vpop.permute.xlu0 %1634
        %1636 = vrot.lane.b32.xlu0 %v1045, 87
        %v1637 = vpop.permute.xlu0 %1636
        %v1638 = vsel %vm870, %v1633, %v1635
        %v1639 = vsel %vm870, %v1635, %v1637
        %v1640 = vsel %vm265, %v1638, 0
        %v1642 = vsel %vm265, %v1639, 0
        %1644 = vmatprep.subr.mxu0 %v1642
        %1645 = vmatpush1.msra.mxu0 %v1640
        %1646 = vmatprep.subr.mxu0 0.0
        %1647 = vmatpush1.msra.mxu0 0.0
        %1648 = vmatprep.subr.mxu0 0.0
        %1649 = vmatpush1.msra.mxu0 0.0
        %1650 = vmatprep.subr.mxu0 0.0
        %1651 = vmatpush1.msra.mxu0 0.0
        %1652 = vmatprep.subr.mxu0 0.0
        %1653 = vmatpush1.msra.mxu0 0.0
        %1654 = vmatprep.subr.mxu0 0.0
        %1655 = vmatpush1.msra.mxu0 0.0
        %1656 = vmatprep.subr.mxu0 0.0
        %1657 = vmatpush1.msra.mxu0 0.0
        %1658 = vmatprep.subr.mxu0 0.0
        %1659 = vmatpush1.msra.mxu0 0.0
        %1660 = vmatprep.subr.mxu0 0.0
        %1661 = vmatpush1.msra.mxu0 0.0
        %1662 = vmatprep.subr.mxu0 0.0
        %1663 = vmatpush1.msra.mxu0 0.0
        %1664 = vmatprep.subr.mxu0 0.0
        %1665 = vmatpush1.msra.mxu0 0.0
        %1666 = vmatprep.subr.mxu0 0.0
        %1667 = vmatpush1.msra.mxu0 0.0
        %1668 = vmatprep.subr.mxu0 0.0
        %1669 = vmatpush1.msra.mxu0 0.0
        %1670 = vmatprep.subr.mxu0 0.0
        %1671 = vmatpush1.msra.mxu0 0.0
        %1672 = vmatprep.subr.mxu0 0.0
        %1673 = vmatpush1.msra.mxu0 0.0
        %1674 = vmatprep.subr.mxu0 0.0
        %1675 = vmatpush1.msra.mxu0 0.0
        %1676 = vmatprep.subr.mxu0 0.0
        %1677 = vmatpush1.msra.mxu0 0.0
        %1678 = vmatprep.subr.mxu0 0.0
        %1679 = vmatpush1.msra.mxu0 0.0
        %1680 = vmatprep.subr.mxu0 0.0
        %1681 = vmatpush1.msra.mxu0 0.0
        %1682 = vmatprep.subr.mxu0 0.0
        %1683 = vmatpush1.msra.mxu0 0.0
        %1684 = vmatprep.subr.mxu0 0.0
        %1685 = vmatpush1.msra.mxu0 0.0
        %1686 = vmatprep.subr.mxu0 0.0
        %1687 = vmatpush1.msra.mxu0 0.0
        %1688 = vmatprep.subr.mxu0 0.0
        %1689 = vmatpush1.msra.mxu0 0.0
        %1690 = vmatprep.subr.mxu0 0.0
        %1691 = vmatpush1.msra.mxu0 0.0
        %1692 = vmatprep.subr.mxu0 0.0
        %1693 = vmatpush1.msra.mxu0 0.0
        %1694 = vmatprep.subr.mxu0 0.0
        %1695 = vmatpush1.msra.mxu0 0.0
        %1696 = vmatprep.subr.mxu0 0.0
        %1697 = vmatpush1.msra.mxu0 0.0
        %1698 = vmatprep.subr.mxu0 0.0
        %1699 = vmatpush1.msra.mxu0 0.0
        %1700 = vmatprep.subr.mxu0 0.0
        %1701 = vmatpush1.msra.mxu0 0.0
        %1702 = vmatprep.subr.mxu0 0.0
        %1703 = vmatpush1.msra.mxu0 0.0
        %1704 = vmatprep.subr.mxu0 0.0
        %1705 = vmatpush1.msra.mxu0 0.0
        %1706 = vmatprep.subr.mxu0 0.0
        %1707 = vmatpush1.msra.mxu0 0.0
        %1708 = vmatprep.mubr.f32.mxu0 0.0
        %1709 = vmatmul.mubr.f32.gmra.mrb[0].mxu0 %v874
        %v1710 = vpop.f32.mrb[0].mxu0
        %v1711 = vadd.f32 0.0, %v1710
        %v1712 = vpop.f32.mrb[0].mxu0
        %v1713 = vadd.f32 0.0, %v1712
        %1714 = vdwg.mxu0
        %v1715 = vadd.f32 %v1630, %v1711
        %v1716 = vadd.f32 %v1631, %v1713
        %1717 = vrot.lane.b32.xlu0 %v1044, 86
        %v1718 = vpop.permute.xlu0 %1717
        %1719 = vrot.lane.b32.xlu0 %v1048, 86
        %v1720 = vpop.permute.xlu0 %1719
        %1721 = vrot.lane.b32.xlu0 %v1045, 86
        %v1722 = vpop.permute.xlu0 %1721
        %v1723 = vsel %vm959, %v1718, %v1720
        %v1724 = vsel %vm959, %v1720, %v1722
        %v1725 = vsel %vm265, %v1723, 0
        %v1727 = vsel %vm265, %v1724, 0
        %1729 = vmatprep.subr.mxu0 %v1727
        %1730 = vmatpush1.msra.mxu0 %v1725
        %1731 = vmatprep.subr.mxu0 0.0
        %1732 = vmatpush1.msra.mxu0 0.0
        %1733 = vmatprep.subr.mxu0 0.0
        %1734 = vmatpush1.msra.mxu0 0.0
        %1735 = vmatprep.subr.mxu0 0.0
        %1736 = vmatpush1.msra.mxu0 0.0
        %1737 = vmatprep.subr.mxu0 0.0
        %1738 = vmatpush1.msra.mxu0 0.0
        %1739 = vmatprep.subr.mxu0 0.0
        %1740 = vmatpush1.msra.mxu0 0.0
        %1741 = vmatprep.subr.mxu0 0.0
        %1742 = vmatpush1.msra.mxu0 0.0
        %1743 = vmatprep.subr.mxu0 0.0
        %1744 = vmatpush1.msra.mxu0 0.0
        %1745 = vmatprep.subr.mxu0 0.0
        %1746 = vmatpush1.msra.mxu0 0.0
        %1747 = vmatprep.subr.mxu0 0.0
        %1748 = vmatpush1.msra.mxu0 0.0
        %1749 = vmatprep.subr.mxu0 0.0
        %1750 = vmatpush1.msra.mxu0 0.0
        %1751 = vmatprep.subr.mxu0 0.0
        %1752 = vmatpush1.msra.mxu0 0.0
        %1753 = vmatprep.subr.mxu0 0.0
        %1754 = vmatpush1.msra.mxu0 0.0
        %1755 = vmatprep.subr.mxu0 0.0
        %1756 = vmatpush1.msra.mxu0 0.0
        %1757 = vmatprep.subr.mxu0 0.0
        %1758 = vmatpush1.msra.mxu0 0.0
        %1759 = vmatprep.subr.mxu0 0.0
        %1760 = vmatpush1.msra.mxu0 0.0
        %1761 = vmatprep.subr.mxu0 0.0
        %1762 = vmatpush1.msra.mxu0 0.0
        %1763 = vmatprep.subr.mxu0 0.0
        %1764 = vmatpush1.msra.mxu0 0.0
        %1765 = vmatprep.subr.mxu0 0.0
        %1766 = vmatpush1.msra.mxu0 0.0
        %1767 = vmatprep.subr.mxu0 0.0
        %1768 = vmatpush1.msra.mxu0 0.0
        %1769 = vmatprep.subr.mxu0 0.0
        %1770 = vmatpush1.msra.mxu0 0.0
        %1771 = vmatprep.subr.mxu0 0.0
        %1772 = vmatpush1.msra.mxu0 0.0
        %1773 = vmatprep.subr.mxu0 0.0
        %1774 = vmatpush1.msra.mxu0 0.0
        %1775 = vmatprep.subr.mxu0 0.0
        %1776 = vmatpush1.msra.mxu0 0.0
        %1777 = vmatprep.subr.mxu0 0.0
        %1778 = vmatpush1.msra.mxu0 0.0
        %1779 = vmatprep.subr.mxu0 0.0
        %1780 = vmatpush1.msra.mxu0 0.0
        %1781 = vmatprep.subr.mxu0 0.0
        %1782 = vmatpush1.msra.mxu0 0.0
        %1783 = vmatprep.subr.mxu0 0.0
        %1784 = vmatpush1.msra.mxu0 0.0
        %1785 = vmatprep.subr.mxu0 0.0
        %1786 = vmatpush1.msra.mxu0 0.0
        %1787 = vmatprep.subr.mxu0 0.0
        %1788 = vmatpush1.msra.mxu0 0.0
        %1789 = vmatprep.subr.mxu0 0.0
        %1790 = vmatpush1.msra.mxu0 0.0
        %1791 = vmatprep.subr.mxu0 0.0
        %1792 = vmatpush1.msra.mxu0 0.0
        %1793 = vmatprep.mubr.f32.mxu0 0.0
        %1794 = vmatmul.mubr.f32.gmra.mrb[0].mxu0 %v963
        %v1795 = vpop.f32.mrb[0].mxu0
        %v1796 = vadd.f32 0.0, %v1795
        %v1797 = vpop.f32.mrb[0].mxu0
        %v1798 = vadd.f32 0.0, %v1797
        %1799 = vdwg.mxu0
        %v1800 = vadd.f32 %v1715, %v1796
        %v1801 = vadd.f32 %v1716, %v1798
        %1802 = vst [vmem:[%s174 + $0x10] sm:$0xff] %v1800
        %1803 = vst [vmem:[%s174 + $0x18] sm:$0xff] %v1801
        %s1804 = sand.u32 %s98, 1
        %s1805 = scalar_lea.sflag [#allocation3], %s1804
        %s1806 = sand.u32 %s98, 1
        %s1807 = smul.addr %s1806, 32
        %s1808 = scalar_lea.vmem [#allocation2], %s1807
        // Predicated region
        $region33: #{tpu_custom_call.1} parent=31 // pred_check
          %p1809 = pneg %p108
        $region34: #{tpu_custom_call.1} parent=31 // pred_check_branch
          %1811 = sbr.rel (%p1809) target = $region36
        $region35: #{tpu_custom_call.1} parent=31 // pred_region
          %s1813 = ssub.s32 512, 512
          %1814 = vsyncadd %s1805, %s1813
          %s1815 = smul.addr %s17, 4
          %s1816 = smul.addr %s1815, 128
          %s1817 = scalar_lea.hbm %s3, %s1816
          %s1819 = sshll.u32 %s1808, 4
          %s1820 = int_to_ptr.vmem [resolvable:$true] %s1819
          %1822 = dma.vmem_to_hbm [thread:$0]  %s1820, 512, %s1817, %s1805
        $region36: #{tpu_custom_call.1} parent=31 // pred_fallthru
          _
      $region32: #{tpu_custom_call.1} parent=5 // pred_fallthru
        _
      %p1823 = scmp.le.s32.totalorder 2, %s12
      // Predicated region
      $region37: #{tpu_custom_call.1} parent=5 // pred_check
        %p1824 = pneg %p1823
      $region38: #{tpu_custom_call.1} parent=5 // pred_check_branch
        %1826 = sbr.rel (%p1824) target = $region40
      $region39: #{tpu_custom_call.1} parent=5 // pred_region
        %s1827 = ssub.s32 %s12, 2
        // Predicated region
        $region41: #{tpu_custom_call.1} parent=39 // pred_check
          %p1828 = pneg %p114
        $region42: #{tpu_custom_call.1} parent=39 // pred_check_branch
          %1830 = sbr.rel (%p1828) target = $region44
        $region43: #{tpu_custom_call.1} parent=39 // pred_region
          %s1831 = sand.u32 %s99, 1
          %s1832 = scalar_lea.sflag [#allocation3], %s1831
          %s1833 = sand.u32 %s99, 1
          %s1834 = smul.addr %s1833, 32
          %s1835 = scalar_lea.vmem [#allocation2], %s1834
          %1836 = dma.done %s1832, 512
        $region44: #{tpu_custom_call.1} parent=39 // pred_fallthru
          _
      $region40: #{tpu_custom_call.1} parent=5 // pred_fallthru
        _
    $region6: #{tpu_custom_call.1} parent=1 // loop_footer
      %s16 = sadd.s32 1, %s12
    $region7: #{tpu_custom_call.1} parent=1 // loop_footer_branch
      %11 = sbr.rel target = $region3
    $region8: #{tpu_custom_call.1} parent=1 // loop_exit
      _
    %1837 = vsyncpa [#allocation3], 1
    %s1838 = scalar_lea.sflag [#allocation3], 1
    %1839 = vsyncpa %s1838, 1

</llo_original>
